<compile_context>
chip_gen: v7x
topology: tpu7x:2x2x1
jax: 0.10.0
libtpu: 0.0.40
codegen_flags: <defaults>
</compile_context>

<pallas_src>
import numpy as np
import jax
import jax.numpy as jnp
from jax.experimental import pallas as pl
from jax.experimental.pallas import tpu as pltpu


def _round_up(x, m):
    return ((x + m - 1) // m) * m


def _cdiv(a, b):
    return -(-a // b)


def _is_v7x():
    try:
        kind = jax.devices()[0].device_kind.lower()
    except Exception:
        return False
    return ("v7" in kind) or ("7x" in kind) or ("tpu7" in kind)


# ----------------------------- Pallas kernel -------------------------------
def _make_kernel(n_layers):
    """Kernel for an n_layers multi_dense stack + (edge, node) heads."""
    def kernel(*refs):
        # refs: x, (w, b) * n_layers, we, be, wn, bn, out_edges, out_nodes
        x_ref = refs[0]
        oe_ref = refs[-2]
        on_ref = refs[-1]
        h = x_ref[...]
        for li in range(n_layers):
            w_ref = refs[1 + 2 * li]
            b_ref = refs[2 + 2 * li]
            acc = jnp.dot(h.astype(w_ref.dtype), w_ref[...],
                          preferred_element_type=jnp.float32)
            # Dropout == identity (eval mode).  tanh kept in f32 (safe on v5e;
            # bf16 tanh on v6e/v7x would be a minor, non-binding EUP saving).
            h = jnp.tanh(acc + b_ref[...])
        we_ref = refs[1 + 2 * n_layers]
        be_ref = refs[2 + 2 * n_layers]
        wn_ref = refs[3 + 2 * n_layers]
        bn_ref = refs[4 + 2 * n_layers]
        hc = h.astype(we_ref.dtype)
        oe_ref[...] = (jnp.dot(hc, we_ref[...], preferred_element_type=jnp.float32)
                       + be_ref[...]).astype(oe_ref.dtype)
        on_ref[...] = (jnp.dot(hc, wn_ref[...], preferred_element_type=jnp.float32)
                       + bn_ref[...]).astype(on_ref.dtype)
    return kernel


# ------------------------------- Wrapper ------------------------------------
def make_generator(conv_dims, z_dim, vertexes, edges, nodes, key,
                   compute_dtype=jnp.bfloat16, out_dtype=None, batch_tile=1024):
    """Deterministically initialize parameters and return a forward fn."""
    V, E, N = vertexes, edges, nodes
    dims = [z_dim] + list(conv_dims)
    dims_pad = [_round_up(d, 128) for d in dims]      # lane-dense activations
    n_layers = len(conv_dims)
    C, C_pad = dims[-1], dims_pad[-1]
    if out_dtype is None:
        out_dtype = compute_dtype
    keys = jax.random.split(key, 2 * n_layers + 4)

    params = {}
    ki = 0
    for li, (c0, c1) in enumerate(zip(dims[:-1], dims[1:])):
        params[f"w{li}"] = 0.1 * jax.random.normal(keys[ki], (c0, c1), jnp.float32); ki += 1
        params[f"b{li}"] = 0.1 * jax.random.normal(keys[ki], (1, c1), jnp.float32); ki += 1
    params["we"] = 0.1 * jax.random.normal(keys[ki], (C, E * V * V), jnp.float32); ki += 1
    params["be"] = 0.1 * jax.random.normal(keys[ki], (1, E * V * V), jnp.float32); ki += 1
    params["wn"] = 0.1 * jax.random.normal(keys[ki], (C, V * N), jnp.float32); ki += 1
    params["bn"] = 0.1 * jax.random.normal(keys[ki], (1, V * N), jnp.float32); ki += 1

    # ---- fold symmetrization + (0,2,3,1) permute into the edge weights ----
    # PyTorch: e = (h @ We + be).view(B,E,V,V); e = (e + e^T_{V,V})/2; e.permute(0,2,3,1)
    # Output flat index o = (i*V + j)*E + k averages input columns (k,i,j) and (k,j,i).
    ii, jj, kk = np.meshgrid(np.arange(V), np.arange(V), np.arange(E), indexing="ij")
    idx_kij = ((kk * V + ii) * V + jj).reshape(-1)
    idx_kji = ((kk * V + jj) * V + ii).reshape(-1)
    we_eff = 0.5 * (params["we"][:, idx_kij] + params["we"][:, idx_kji])
    be_eff = 0.5 * (params["be"][:, idx_kij] + params["be"][:, idx_kji])

    n_edge = E * V * V
    n_node = V * N

    # ---- zero-pad activation dims to lane multiples (numerically identical) ----
    ws, bs = [], []
    for li in range(n_layers):
        w = jnp.pad(params[f"w{li}"],
                    ((0, dims_pad[li] - dims[li]),
                     (0, dims_pad[li + 1] - dims[li + 1])))
        b = jnp.pad(params[f"b{li}"], ((0, 0), (0, dims_pad[li + 1] - dims[li + 1])))
        ws.append(w.astype(compute_dtype))   # weights streamed in compute dtype
        bs.append(b)                          # biases stay f32 (f32 accumulator)
    we_c = jnp.pad(we_eff, ((0, C_pad - C), (0, 0))).astype(compute_dtype)
    wn_c = jnp.pad(params["wn"], ((0, C_pad - C), (0, 0))).astype(compute_dtype)
    be_f = be_eff
    bn_f = params["bn"]

    weight_args = []
    for w, b in zip(ws, bs):
        weight_args += [w, b]
    weight_args += [we_c, be_f, wn_c, bn_f]

    kernel = _make_kernel(n_layers)
    z_pad = dims_pad[0]
    out_isz = int(np.dtype(out_dtype).itemsize)
    core_parallel = _is_v7x()
    dim_sem = (pltpu.CORE_PARALLEL,) if core_parallel else (pltpu.PARALLEL,)
    w_bytes = sum(int(np.prod(a.shape)) * int(np.dtype(a.dtype).itemsize)
                  for a in weight_args)

    def forward(x):
        B = x.shape[0]
        # Balanced batch tiles: minimize padded rows, multiple of 8 sublanes.
        n_tiles = max(1, _cdiv(B, batch_tile))
        if core_parallel and n_tiles == 1 and B >= 16:
            n_tiles = 2               # give both v7x TensorCores work
        tb = _round_up(_cdiv(B, n_tiles), 8)
        b_pad = _round_up(B, tb)
        grid = (b_pad // tb,)
        if b_pad != B or z_pad != z_dim:
            x_p = jnp.pad(x, ((0, b_pad - B), (0, z_pad - z_dim)))
        else:
            x_p = x

        # Advisory cost estimate so XLA can schedule around this custom call.
        flops = 2 * b_pad * (sum(c0 * c1 for c0, c1 in zip(dims_pad[:-1], dims_pad[1:]))
                             + C_pad * (n_edge + n_node))
        trans = b_pad * sum(dims_pad[1:])
        bytes_acc = (b_pad * z_pad * 4
                     + b_pad * (n_edge + n_node) * out_isz
                     + w_bytes)

        # VMEM budget: double-buffered I/O tiles + single-buffered weights
        # + activation working set, with 2x margin (clamped to [16, 48] MiB).
        io_bytes = 2 * tb * z_pad * 4 + 2 * tb * (n_edge + n_node) * out_isz
        act_bytes = (n_layers + 1) * tb * max(dims_pad) * 4
        vmem_limit = int(min(max(2 * (w_bytes + io_bytes + act_bytes), 16 << 20),
                             48 << 20))

        def run(single_buffer_weights):
            if single_buffer_weights:
                def const_spec(shp):
                    return pl.BlockSpec(shp, lambda i: (0, 0),
                                        pipeline_mode=pl.Buffered(1))
            else:
                def const_spec(shp):
                    return pl.BlockSpec(shp, lambda i: (0, 0))
            in_specs = [pl.BlockSpec((tb, z_pad), lambda i: (i, 0))]
            in_specs += [const_spec(a.shape) for a in weight_args]
            out_specs = (pl.BlockSpec((tb, n_edge), lambda i: (i, 0)),
                         pl.BlockSpec((tb, n_node), lambda i: (i, 0)))
            return pl.pallas_call(
                kernel,
                out_shape=(jax.ShapeDtypeStruct((b_pad, n_edge), out_dtype),
                           jax.ShapeDtypeStruct((b_pad, n_node), out_dtype)),
                grid=grid,
                in_specs=in_specs,
                out_specs=out_specs,
                compiler_params=pltpu.CompilerParams(
                    dimension_semantics=dim_sem,
                    vmem_limit_bytes=vmem_limit),
                cost_estimate=pl.CostEstimate(
                    flops=int(flops), transcendentals=int(trans),
                    bytes_accessed=int(bytes_acc)),
            )(x_p, *weight_args)

        try:
            oe, on = run(True)
        except Exception:
            # Fallback if single-buffered weights (pl.Buffered(1)) are not
            # supported by this jax build; default double buffering is correct.
            oe, on = run(False)

        if b_pad != B:
            oe = oe[:B]
            on = on[:B]
        edges_logits = oe.reshape(B, V, V, E)      # (B, V, V, E)
        nodes_logits = on.reshape(B, V, N)         # (B, V, N)
        return edges_logits, nodes_logits

    return forward, params


# ----------------------- Pure-JAX reference (PyTorch semantics) -------------
def reference_forward(x, params, conv_dims, vertexes, edges, nodes):
    V, E, N = vertexes, edges, nodes
    B = x.shape[0]
    h = x
    for li in range(len(conv_dims)):
        h = jnp.tanh(h @ params[f"w{li}"] + params[f"b{li}"])
    e = (h @ params["we"] + params["be"]).reshape(B, E, V, V)
    e = (e + jnp.transpose(e, (0, 1, 3, 2))) / 2.0
    e = jnp.transpose(e, (0, 2, 3, 1))                  # (B, V, V, E)
    n = (h @ params["wn"] + params["bn"]).reshape(B, V, N)
    return e, n


if __name__ == "__main__":
    # Small, forward-consistent shapes.
    B = 2
    Z_DIM = 8
    CONV_DIMS = [32, 64]
    VERTEXES = 8
    EDGES = 4
    NODES = 4

    key = jax.random.PRNGKey(0)
    kx, kp = jax.random.split(key)
    x = jax.random.normal(kx, (B, Z_DIM), jnp.float32)

    # f32 build: exact parity with the (eval-mode) PyTorch forward.
    fwd_f32, params = make_generator(CONV_DIMS, Z_DIM, VERTEXES, EDGES, NODES, kp,
                                     compute_dtype=jnp.float32)
    e32, n32 = fwd_f32(x)
    jax.block_until_ready((e32, n32))

    # bf16 build (default / recommended): bf16 weights + bf16 output storage,
    # f32 MXU accumulation; expect ~1e-2-level relative error.
    fwd_bf16, _ = make_generator(CONV_DIMS, Z_DIM, VERTEXES, EDGES, NODES, kp,
                                 compute_dtype=jnp.bfloat16)
    e16, n16 = fwd_bf16(x)
    jax.block_until_ready((e16, n16))

    e_ref, n_ref = reference_forward(x, params, CONV_DIMS, VERTEXES, EDGES, NODES)
    assert e32.shape == (B, VERTEXES, VERTEXES, EDGES)
    assert n32.shape == (B, VERTEXES, NODES)
    np.testing.assert_allclose(np.asarray(e32), np.asarray(e_ref),
                               rtol=1e-5, atol=1e-5)
    np.testing.assert_allclose(np.asarray(n32), np.asarray(n_ref),
                               rtol=1e-5, atol=1e-5)
    np.testing.assert_allclose(np.asarray(jnp.asarray(e16, jnp.float32)),
                               np.asarray(e_ref), rtol=5e-2, atol=5e-2)
    np.testing.assert_allclose(np.asarray(jnp.asarray(n16, jnp.float32)),
                               np.asarray(n_ref), rtol=5e-2, atol=5e-2)

    print("KERNEL_OK")
</pallas_src>

<mosaic_0001>
module attributes {stable_mosaic.version = 11 : i64} {
  func.func @kernel(%arg0: i32, %arg1: memref<8x128xf32, #tpu.memory_space<vmem>>, %arg2: memref<128x128xf32, #tpu.memory_space<vmem>>, %arg3: memref<1x128xf32, #tpu.memory_space<vmem>>, %arg4: memref<128x128xf32, #tpu.memory_space<vmem>>, %arg5: memref<1x128xf32, #tpu.memory_space<vmem>>, %arg6: memref<128x256xf32, #tpu.memory_space<vmem>>, %arg7: memref<1x256xf32, #tpu.memory_space<vmem>>, %arg8: memref<128x32xf32, #tpu.memory_space<vmem>>, %arg9: memref<1x32xf32, #tpu.memory_space<vmem>>, %arg10: memref<8x256xf32, #tpu.memory_space<vmem>>, %arg11: memref<8x32xf32, #tpu.memory_space<vmem>>) attributes {dimension_semantics = [#tpu.dimension_semantics<parallel>], iteration_bounds = array<i64: 1>, scalar_prefetch = 0 : i64, scratch_operands = 0 : i64, tpu.core_type = #tpu.core_type<tc>, window_params = [{transform_indices = @transform_0, window_bounds = array<i64: 8, 128>}, {pipeline_mode = #tpu.pipeline_mode<synchronous>, transform_indices = @transform_1, window_bounds = array<i64: 128, 128>}, {pipeline_mode = #tpu.pipeline_mode<synchronous>, transform_indices = @transform_2, window_bounds = array<i64: 1, 128>}, {pipeline_mode = #tpu.pipeline_mode<synchronous>, transform_indices = @transform_3, window_bounds = array<i64: 128, 128>}, {pipeline_mode = #tpu.pipeline_mode<synchronous>, transform_indices = @transform_4, window_bounds = array<i64: 1, 128>}, {pipeline_mode = #tpu.pipeline_mode<synchronous>, transform_indices = @transform_5, window_bounds = array<i64: 128, 256>}, {pipeline_mode = #tpu.pipeline_mode<synchronous>, transform_indices = @transform_6, window_bounds = array<i64: 1, 256>}, {pipeline_mode = #tpu.pipeline_mode<synchronous>, transform_indices = @transform_7, window_bounds = array<i64: 128, 32>}, {pipeline_mode = #tpu.pipeline_mode<synchronous>, transform_indices = @transform_8, window_bounds = array<i64: 1, 32>}, {transform_indices = @transform_9, window_bounds = array<i64: 8, 256>}, {transform_indices = @transform_10, window_bounds = array<i64: 8, 32>}]} {
    %c0 = arith.constant 0 : index
    %c0_0 = arith.constant 0 : index
    %0 = vector.load %arg1[%c0, %c0_0] : memref<8x128xf32, #tpu.memory_space<vmem>>, vector<8x128xf32>
    %c0_1 = arith.constant 0 : index
    %c0_2 = arith.constant 0 : index
    %1 = vector.load %arg2[%c0_1, %c0_2] : memref<128x128xf32, #tpu.memory_space<vmem>>, vector<128x128xf32>
    %cst = arith.constant dense<0.000000e+00> : vector<8x128xf32>
    %2 = tpu.matmul %0, %1, %cst {dimension_numbers = #tpu.dot_dimension_numbers<[1], [0], [0], [1], [0, 0, 1, 1], [], []>} : vector<8x128xf32>, vector<128x128xf32>, vector<8x128xf32> -> vector<8x128xf32>
    %c0_3 = arith.constant 0 : index
    %c0_4 = arith.constant 0 : index
    %3 = vector.load %arg3[%c0_3, %c0_4] : memref<1x128xf32, #tpu.memory_space<vmem>>, vector<1x128xf32>
    %4 = vector.broadcast %3 : vector<1x128xf32> to vector<8x128xf32>
    %5 = arith.addf %2, %4 : vector<8x128xf32>
    %6 = math.tanh %5 : vector<8x128xf32>
    %c0_5 = arith.constant 0 : index
    %c0_6 = arith.constant 0 : index
    %7 = vector.load %arg4[%c0_5, %c0_6] : memref<128x128xf32, #tpu.memory_space<vmem>>, vector<128x128xf32>
    %cst_7 = arith.constant dense<0.000000e+00> : vector<8x128xf32>
    %8 = tpu.matmul %6, %7, %cst_7 {dimension_numbers = #tpu.dot_dimension_numbers<[1], [0], [0], [1], [0, 0, 1, 1], [], []>} : vector<8x128xf32>, vector<128x128xf32>, vector<8x128xf32> -> vector<8x128xf32>
    %c0_8 = arith.constant 0 : index
    %c0_9 = arith.constant 0 : index
    %9 = vector.load %arg5[%c0_8, %c0_9] : memref<1x128xf32, #tpu.memory_space<vmem>>, vector<1x128xf32>
    %10 = vector.broadcast %9 : vector<1x128xf32> to vector<8x128xf32>
    %11 = arith.addf %8, %10 : vector<8x128xf32>
    %12 = math.tanh %11 : vector<8x128xf32>
    %c0_10 = arith.constant 0 : index
    %c0_11 = arith.constant 0 : index
    %13 = vector.load %arg6[%c0_10, %c0_11] : memref<128x256xf32, #tpu.memory_space<vmem>>, vector<128x256xf32>
    %cst_12 = arith.constant dense<0.000000e+00> : vector<8x256xf32>
    %14 = tpu.matmul %12, %13, %cst_12 {dimension_numbers = #tpu.dot_dimension_numbers<[1], [0], [0], [1], [0, 0, 1, 1], [], []>} : vector<8x128xf32>, vector<128x256xf32>, vector<8x256xf32> -> vector<8x256xf32>
    %c0_13 = arith.constant 0 : index
    %c0_14 = arith.constant 0 : index
    %15 = vector.load %arg7[%c0_13, %c0_14] : memref<1x256xf32, #tpu.memory_space<vmem>>, vector<1x256xf32>
    %16 = vector.broadcast %15 : vector<1x256xf32> to vector<8x256xf32>
    %17 = arith.addf %14, %16 : vector<8x256xf32>
    %c0_15 = arith.constant 0 : index
    %c0_16 = arith.constant 0 : index
    %18 = vector.load %arg10[%c0_15, %c0_16] : memref<8x256xf32, #tpu.memory_space<vmem>>, vector<8x256xf32>
    tpu.vector_store %arg10[%c0_15, %c0_16], %17 {strides = array<i32>} : memref<8x256xf32, #tpu.memory_space<vmem>>, vector<8x256xf32>,
    %c0_17 = arith.constant 0 : index
    %c0_18 = arith.constant 0 : index
    %19 = vector.load %arg8[%c0_17, %c0_18] : memref<128x32xf32, #tpu.memory_space<vmem>>, vector<128x32xf32>
    %cst_19 = arith.constant dense<0.000000e+00> : vector<8x32xf32>
    %20 = tpu.matmul %12, %19, %cst_19 {dimension_numbers = #tpu.dot_dimension_numbers<[1], [0], [0], [1], [0, 0, 1, 1], [], []>} : vector<8x128xf32>, vector<128x32xf32>, vector<8x32xf32> -> vector<8x32xf32>
    %c0_20 = arith.constant 0 : index
    %c0_21 = arith.constant 0 : index
    %21 = vector.load %arg9[%c0_20, %c0_21] : memref<1x32xf32, #tpu.memory_space<vmem>>, vector<1x32xf32>
    %22 = vector.broadcast %21 : vector<1x32xf32> to vector<8x32xf32>
    %23 = arith.addf %20, %22 : vector<8x32xf32>
    %c0_22 = arith.constant 0 : index
    %c0_23 = arith.constant 0 : index
    %24 = vector.load %arg11[%c0_22, %c0_23] : memref<8x32xf32, #tpu.memory_space<vmem>>, vector<8x32xf32>
    tpu.vector_store %arg11[%c0_22, %c0_23], %23 {strides = array<i32>} : memref<8x32xf32, #tpu.memory_space<vmem>>, vector<8x32xf32>,
    return
  }
  func.func @transform_0(%arg0: i32) -> (i32, i32) {
    %c0_i32 = arith.constant 0 : i32
    %c0_i32_0 = arith.constant 0 : i32
    return %arg0, %c0_i32 : i32, i32
  }
  func.func @transform_1(%arg0: i32) -> (i32, i32) {
    %c0_i32 = arith.constant 0 : i32
    %c0_i32_0 = arith.constant 0 : i32
    %c0_i32_1 = arith.constant 0 : i32
    return %c0_i32, %c0_i32_0 : i32, i32
  }
  func.func @transform_2(%arg0: i32) -> (i32, i32) {
    %c0_i32 = arith.constant 0 : i32
    %c0_i32_0 = arith.constant 0 : i32
    %c0_i32_1 = arith.constant 0 : i32
    return %c0_i32, %c0_i32_0 : i32, i32
  }
  func.func @transform_3(%arg0: i32) -> (i32, i32) {
    %c0_i32 = arith.constant 0 : i32
    %c0_i32_0 = arith.constant 0 : i32
    %c0_i32_1 = arith.constant 0 : i32
    return %c0_i32, %c0_i32_0 : i32, i32
  }
  func.func @transform_4(%arg0: i32) -> (i32, i32) {
    %c0_i32 = arith.constant 0 : i32
    %c0_i32_0 = arith.constant 0 : i32
    %c0_i32_1 = arith.constant 0 : i32
    return %c0_i32, %c0_i32_0 : i32, i32
  }
  func.func @transform_5(%arg0: i32) -> (i32, i32) {
    %c0_i32 = arith.constant 0 : i32
    %c0_i32_0 = arith.constant 0 : i32
    %c0_i32_1 = arith.constant 0 : i32
    return %c0_i32, %c0_i32_0 : i32, i32
  }
  func.func @transform_6(%arg0: i32) -> (i32, i32) {
    %c0_i32 = arith.constant 0 : i32
    %c0_i32_0 = arith.constant 0 : i32
    %c0_i32_1 = arith.constant 0 : i32
    return %c0_i32, %c0_i32_0 : i32, i32
  }
  func.func @transform_7(%arg0: i32) -> (i32, i32) {
    %c0_i32 = arith.constant 0 : i32
    %c0_i32_0 = arith.constant 0 : i32
    %c0_i32_1 = arith.constant 0 : i32
    return %c0_i32, %c0_i32_0 : i32, i32
  }
  func.func @transform_8(%arg0: i32) -> (i32, i32) {
    %c0_i32 = arith.constant 0 : i32
    %c0_i32_0 = arith.constant 0 : i32
    %c0_i32_1 = arith.constant 0 : i32
    return %c0_i32, %c0_i32_0 : i32, i32
  }
  func.func @transform_9(%arg0: i32) -> (i32, i32) {
    %c0_i32 = arith.constant 0 : i32
    %c0_i32_0 = arith.constant 0 : i32
    return %arg0, %c0_i32 : i32, i32
  }
  func.func @transform_10(%arg0: i32) -> (i32, i32) {
    %c0_i32 = arith.constant 0 : i32
    %c0_i32_0 = arith.constant 0 : i32
    return %arg0, %c0_i32 : i32, i32
  }
}

module attributes {stable_mosaic.version = 11 : i64} {
  func.func @kernel(%arg0: i32, %arg1: memref<8x128xf32, #tpu.memory_space<vmem>>, %arg2: memref<128x128xf32, #tpu.memory_space<vmem>>, %arg3: memref<1x128xf32, #tpu.memory_space<vmem>>, %arg4: memref<128x128xf32, #tpu.memory_space<vmem>>, %arg5: memref<1x128xf32, #tpu.memory_space<vmem>>, %arg6: memref<128x256xf32, #tpu.memory_space<vmem>>, %arg7: memref<1x256xf32, #tpu.memory_space<vmem>>, %arg8: memref<128x32xf32, #tpu.memory_space<vmem>>, %arg9: memref<1x32xf32, #tpu.memory_space<vmem>>, %arg10: memref<8x256xf32, #tpu.memory_space<vmem>>, %arg11: memref<8x32xf32, #tpu.memory_space<vmem>>) attributes {dimension_semantics = [#tpu.dimension_semantics<parallel>], iteration_bounds = array<i64: 1>, scalar_prefetch = 0 : i64, scratch_operands = 0 : i64, tpu.core_type = #tpu.core_type<tc>, window_params = [{transform_indices = @transform_0, window_bounds = array<i64: 8, 128>}, {pipeline_mode = #tpu.pipeline_mode<synchronous>, transform_indices = @transform_1, window_bounds = array<i64: 128, 128>}, {pipeline_mode = #tpu.pipeline_mode<synchronous>, transform_indices = @transform_2, window_bounds = array<i64: 1, 128>}, {pipeline_mode = #tpu.pipeline_mode<synchronous>, transform_indices = @transform_3, window_bounds = array<i64: 128, 128>}, {pipeline_mode = #tpu.pipeline_mode<synchronous>, transform_indices = @transform_4, window_bounds = array<i64: 1, 128>}, {pipeline_mode = #tpu.pipeline_mode<synchronous>, transform_indices = @transform_5, window_bounds = array<i64: 128, 256>}, {pipeline_mode = #tpu.pipeline_mode<synchronous>, transform_indices = @transform_6, window_bounds = array<i64: 1, 256>}, {pipeline_mode = #tpu.pipeline_mode<synchronous>, transform_indices = @transform_7, window_bounds = array<i64: 128, 32>}, {pipeline_mode = #tpu.pipeline_mode<synchronous>, transform_indices = @transform_8, window_bounds = array<i64: 1, 32>}, {transform_indices = @transform_9, window_bounds = array<i64: 8, 256>}, {transform_indices = @transform_10, window_bounds = array<i64: 8, 32>}]} {
    %c0 = arith.constant 0 : index
    %c0_0 = arith.constant 0 : index
    %0 = vector.load %arg1[%c0, %c0_0] : memref<8x128xf32, #tpu.memory_space<vmem>>, vector<8x128xf32>
    %c0_1 = arith.constant 0 : index
    %c0_2 = arith.constant 0 : index
    %1 = vector.load %arg2[%c0_1, %c0_2] : memref<128x128xf32, #tpu.memory_space<vmem>>, vector<128x128xf32>
    %cst = arith.constant dense<0.000000e+00> : vector<8x128xf32>
    %2 = tpu.matmul %0, %1, %cst {dimension_numbers = #tpu.dot_dimension_numbers<[1], [0], [0], [1], [0, 0, 1, 1], [], []>} : vector<8x128xf32>, vector<128x128xf32>, vector<8x128xf32> -> vector<8x128xf32>
    %c0_3 = arith.constant 0 : index
    %c0_4 = arith.constant 0 : index
    %3 = vector.load %arg3[%c0_3, %c0_4] : memref<1x128xf32, #tpu.memory_space<vmem>>, vector<1x128xf32>
    %4 = vector.broadcast %3 : vector<1x128xf32> to vector<8x128xf32>
    %5 = arith.addf %2, %4 : vector<8x128xf32>
    %6 = math.tanh %5 : vector<8x128xf32>
    %c0_5 = arith.constant 0 : index
    %c0_6 = arith.constant 0 : index
    %7 = vector.load %arg4[%c0_5, %c0_6] : memref<128x128xf32, #tpu.memory_space<vmem>>, vector<128x128xf32>
    %cst_7 = arith.constant dense<0.000000e+00> : vector<8x128xf32>
    %8 = tpu.matmul %6, %7, %cst_7 {dimension_numbers = #tpu.dot_dimension_numbers<[1], [0], [0], [1], [0, 0, 1, 1], [], []>} : vector<8x128xf32>, vector<128x128xf32>, vector<8x128xf32> -> vector<8x128xf32>
    %c0_8 = arith.constant 0 : index
    %c0_9 = arith.constant 0 : index
    %9 = vector.load %arg5[%c0_8, %c0_9] : memref<1x128xf32, #tpu.memory_space<vmem>>, vector<1x128xf32>
    %10 = vector.broadcast %9 : vector<1x128xf32> to vector<8x128xf32>
    %11 = arith.addf %8, %10 : vector<8x128xf32>
    %12 = math.tanh %11 : vector<8x128xf32>
    %c0_10 = arith.constant 0 : index
    %c0_11 = arith.constant 0 : index
    %13 = vector.load %arg6[%c0_10, %c0_11] : memref<128x256xf32, #tpu.memory_space<vmem>>, vector<128x256xf32>
    %cst_12 = arith.constant dense<0.000000e+00> : vector<8x256xf32>
    %14 = tpu.matmul %12, %13, %cst_12 {dimension_numbers = #tpu.dot_dimension_numbers<[1], [0], [0], [1], [0, 0, 1, 1], [], []>} : vector<8x128xf32>, vector<128x256xf32>, vector<8x256xf32> -> vector<8x256xf32>
    %c0_13 = arith.constant 0 : index
    %c0_14 = arith.constant 0 : index
    %15 = vector.load %arg7[%c0_13, %c0_14] : memref<1x256xf32, #tpu.memory_space<vmem>>, vector<1x256xf32>
    %16 = vector.broadcast %15 : vector<1x256xf32> to vector<8x256xf32>
    %17 = arith.addf %14, %16 : vector<8x256xf32>
    %c0_15 = arith.constant 0 : index
    %c0_16 = arith.constant 0 : index
    %18 = vector.load %arg10[%c0_15, %c0_16] : memref<8x256xf32, #tpu.memory_space<vmem>>, vector<8x256xf32>
    tpu.vector_store %arg10[%c0_15, %c0_16], %17 {strides = array<i32>} : memref<8x256xf32, #tpu.memory_space<vmem>>, vector<8x256xf32>,
    %c0_17 = arith.constant 0 : index
    %c0_18 = arith.constant 0 : index
    %19 = vector.load %arg8[%c0_17, %c0_18] : memref<128x32xf32, #tpu.memory_space<vmem>>, vector<128x32xf32>
    %cst_19 = arith.constant dense<0.000000e+00> : vector<8x32xf32>
    %20 = tpu.matmul %12, %19, %cst_19 {dimension_numbers = #tpu.dot_dimension_numbers<[1], [0], [0], [1], [0, 0, 1, 1], [], []>} : vector<8x128xf32>, vector<128x32xf32>, vector<8x32xf32> -> vector<8x32xf32>
    %c0_20 = arith.constant 0 : index
    %c0_21 = arith.constant 0 : index
    %21 = vector.load %arg9[%c0_20, %c0_21] : memref<1x32xf32, #tpu.memory_space<vmem>>, vector<1x32xf32>
    %22 = vector.broadcast %21 : vector<1x32xf32> to vector<8x32xf32>
    %23 = arith.addf %20, %22 : vector<8x32xf32>
    %c0_22 = arith.constant 0 : index
    %c0_23 = arith.constant 0 : index
    %24 = vector.load %arg11[%c0_22, %c0_23] : memref<8x32xf32, #tpu.memory_space<vmem>>, vector<8x32xf32>
    tpu.vector_store %arg11[%c0_22, %c0_23], %23 {strides = array<i32>} : memref<8x32xf32, #tpu.memory_space<vmem>>, vector<8x32xf32>,
    return
  }
  func.func @transform_0(%arg0: i32) -> (i32, i32) {
    %c0_i32 = arith.constant 0 : i32
    %c0_i32_0 = arith.constant 0 : i32
    return %arg0, %c0_i32 : i32, i32
  }
  func.func @transform_1(%arg0: i32) -> (i32, i32) {
    %c0_i32 = arith.constant 0 : i32
    %c0_i32_0 = arith.constant 0 : i32
    %c0_i32_1 = arith.constant 0 : i32
    return %c0_i32, %c0_i32_0 : i32, i32
  }
  func.func @transform_2(%arg0: i32) -> (i32, i32) {
    %c0_i32 = arith.constant 0 : i32
    %c0_i32_0 = arith.constant 0 : i32
    %c0_i32_1 = arith.constant 0 : i32
    return %c0_i32, %c0_i32_0 : i32, i32
  }
  func.func @transform_3(%arg0: i32) -> (i32, i32) {
    %c0_i32 = arith.constant 0 : i32
    %c0_i32_0 = arith.constant 0 : i32
    %c0_i32_1 = arith.constant 0 : i32
    return %c0_i32, %c0_i32_0 : i32, i32
  }
  func.func @transform_4(%arg0: i32) -> (i32, i32) {
    %c0_i32 = arith.constant 0 : i32
    %c0_i32_0 = arith.constant 0 : i32
    %c0_i32_1 = arith.constant 0 : i32
    return %c0_i32, %c0_i32_0 : i32, i32
  }
  func.func @transform_5(%arg0: i32) -> (i32, i32) {
    %c0_i32 = arith.constant 0 : i32
    %c0_i32_0 = arith.constant 0 : i32
    %c0_i32_1 = arith.constant 0 : i32
    return %c0_i32, %c0_i32_0 : i32, i32
  }
  func.func @transform_6(%arg0: i32) -> (i32, i32) {
    %c0_i32 = arith.constant 0 : i32
    %c0_i32_0 = arith.constant 0 : i32
    %c0_i32_1 = arith.constant 0 : i32
    return %c0_i32, %c0_i32_0 : i32, i32
  }
  func.func @transform_7(%arg0: i32) -> (i32, i32) {
    %c0_i32 = arith.constant 0 : i32
    %c0_i32_0 = arith.constant 0 : i32
    %c0_i32_1 = arith.constant 0 : i32
    return %c0_i32, %c0_i32_0 : i32, i32
  }
  func.func @transform_8(%arg0: i32) -> (i32, i32) {
    %c0_i32 = arith.constant 0 : i32
    %c0_i32_0 = arith.constant 0 : i32
    %c0_i32_1 = arith.constant 0 : i32
    return %c0_i32, %c0_i32_0 : i32, i32
  }
  func.func @transform_9(%arg0: i32) -> (i32, i32) {
    %c0_i32 = arith.constant 0 : i32
    %c0_i32_0 = arith.constant 0 : i32
    return %arg0, %c0_i32 : i32, i32
  }
  func.func @transform_10(%arg0: i32) -> (i32, i32) {
    %c0_i32 = arith.constant 0 : i32
    %c0_i32_0 = arith.constant 0 : i32
    return %arg0, %c0_i32 : i32, i32
  }
}

</mosaic_0001>

<llo_original>
// kernel: tpu_custom_call.1
$region0: #{tpu_custom_call.1}
  #allocation0 [shape = 'u32[]', space=smem, size = 0x4, offset = 0x4, fixed_abs, tag = 'smem constant byte address 0x4 - core index']
  #allocation1 [shape = 'u32[144,128]{1,0:T(1,128)}', space=vmem, size = 0x12000, scoped, tag = 'internal scratch']
  %s0 = inlined_call_operand.vmem [shape: f32[8,128], index: 0, kind: input, shape index: {}]
  %s1 = inlined_call_operand.vmem [shape: f32[128,128], index: 1, kind: input, shape index: {}]
  %s2 = inlined_call_operand.vmem [shape: f32[1,128], index: 2, kind: input, shape index: {}]
  %s3 = inlined_call_operand.hbm [shape: f32[128,128], index: 3, kind: input, shape index: {}]
  %s4 = inlined_call_operand.vmem [shape: f32[1,128], index: 4, kind: input, shape index: {}]
  %s5 = inlined_call_operand.hbm [shape: f32[128,256], index: 5, kind: input, shape index: {}]
  %s6 = inlined_call_operand.vmem [shape: f32[1,256], index: 6, kind: input, shape index: {}]
  %s7 = inlined_call_operand.vmem [shape: f32[128,32], index: 7, kind: input, shape index: {}]
  %s8 = inlined_call_operand.vmem [shape: f32[1,32], index: 8, kind: input, shape index: {}]
  %s9 = inlined_call_operand.hbm [shape: f32[8,256], index: 9, kind: output, shape index: {0}]
  %s10 = inlined_call_operand.hbm [shape: f32[8,32], index: 10, kind: output, shape index: {1}]
  %11 = xla_tuple %s9, %s10
  %s12 = sld [smem:[#allocation0]]
  $region62: #{tpu_custom_call.1} parent=0
    _
  %s14 = ssub.s32 1, %s12
  %s15 = scalar_select 0, %s14, %s12
  $region1: #{tpu_custom_call.1} parent=0
    #allocation2 [shape = 'u8[65536]{0}', space=vmem, size = 0x10000, scoped, tag = 'input window, operand 3, single buffered']
    #allocation3 [shape = 's32[1]{0}', space=sflag, size = 0x4, scoped, tag = 'scoped memory for tpu_custom_call.1']
    #allocation4 [shape = 's32[1]{0}', space=sflag, size = 0x4, scoped, tag = 'scoped memory for tpu_custom_call.1']
    #allocation5 [shape = 'u8[131072]{0}', space=vmem, size = 0x20000, scoped, tag = 'input window, operand 5, single buffered']
    #allocation6 [shape = 's32[1]{0}', space=sflag, size = 0x4, scoped, tag = 'scoped memory for tpu_custom_call.1']
    #allocation7 [shape = 'u8[8192]{0}', space=vmem, size = 0x2000, scoped, tag = 'output window, operand 0, single buffered']
    #allocation8 [shape = 'u8[4096]{0}', space=vmem, size = 0x1000, scoped, tag = 'output window, operand 1, single buffered']
    #allocation9 [shape = 's32[1]{0}', space=sflag, size = 0x4, scoped, tag = 'scoped memory for tpu_custom_call.1']
    %16 = vsyncpa [#allocation3], 0
    %17 = vsyncpa [#allocation6], 0
    %18 = vsyncpa [#allocation4], 0
    %19 = vsyncpa [#allocation9], 0
    // Predicated region
    $region2: #{tpu_custom_call.1} parent=1 // pred_check
      _
    $region3: #{tpu_custom_call.1} parent=1 // pred_check_branch
      %21 = sbr.rel (0) target = $region5
    $region4: #{tpu_custom_call.1} parent=1 // pred_region
      _
    $region5: #{tpu_custom_call.1} parent=1 // pred_fallthru
      _
    // Predicated region
    $region6: #{tpu_custom_call.1} parent=1 // pred_check
      _
    $region7: #{tpu_custom_call.1} parent=1 // pred_check_branch
      %23 = sbr.rel (0) target = $region9
    $region8: #{tpu_custom_call.1} parent=1 // pred_region
      _
    $region9: #{tpu_custom_call.1} parent=1 // pred_fallthru
      _
    // Predicated region
    $region10: #{tpu_custom_call.1} parent=1 // pred_check
      _
    $region11: #{tpu_custom_call.1} parent=1 // pred_check_branch
      %25 = sbr.rel (0) target = $region13
    $region12: #{tpu_custom_call.1} parent=1 // pred_region
      _
    $region13: #{tpu_custom_call.1} parent=1 // pred_fallthru
      _
    // Predicated region
    $region14: #{tpu_custom_call.1} parent=1 // pred_check
      _
    $region15: #{tpu_custom_call.1} parent=1 // pred_check_branch
      %27 = sbr.rel (0) target = $region17
    $region16: #{tpu_custom_call.1} parent=1 // pred_region
      %s29 = ssub.s32 2048, 2048
      %30 = vsyncadd [#allocation3], %s29
      %s31 = sshll.u32 [#allocation2], 4
      %s32 = int_to_ptr.vmem [resolvable:$true] %s31
      %37 = dma.hbm_to_vmem [thread:$0]  %s3, 2048, %s32, [#allocation3], 128, 128, 8
    $region17: #{tpu_custom_call.1} parent=1 // pred_fallthru
      _
    // Predicated region
    $region18: #{tpu_custom_call.1} parent=1 // pred_check
      _
    $region19: #{tpu_custom_call.1} parent=1 // pred_check_branch
      %39 = sbr.rel (0) target = $region21
    $region20: #{tpu_custom_call.1} parent=1 // pred_region
      _
    $region21: #{tpu_custom_call.1} parent=1 // pred_fallthru
      _
    // Predicated region
    $region22: #{tpu_custom_call.1} parent=1 // pred_check
      _
    $region23: #{tpu_custom_call.1} parent=1 // pred_check_branch
      %41 = sbr.rel (0) target = $region25
    $region24: #{tpu_custom_call.1} parent=1 // pred_region
      %s43 = ssub.s32 4096, 4096
      %44 = vsyncadd [#allocation6], %s43
      %s45 = sshll.u32 [#allocation5], 4
      %s46 = int_to_ptr.vmem [resolvable:$true] %s45
      %51 = dma.hbm_to_vmem [thread:$0]  %s5, 4096, %s46, [#allocation6], 256, 256, 16
    $region25: #{tpu_custom_call.1} parent=1 // pred_fallthru
      _
    // Predicated region
    $region26: #{tpu_custom_call.1} parent=1 // pred_check
      _
    $region27: #{tpu_custom_call.1} parent=1 // pred_check_branch
      %53 = sbr.rel (0) target = $region29
    $region28: #{tpu_custom_call.1} parent=1 // pred_region
      _
    $region29: #{tpu_custom_call.1} parent=1 // pred_fallthru
      _
    // Predicated region
    $region30: #{tpu_custom_call.1} parent=1 // pred_check
      _
    $region31: #{tpu_custom_call.1} parent=1 // pred_check_branch
      %55 = sbr.rel (0) target = $region33
    $region32: #{tpu_custom_call.1} parent=1 // pred_region
      _
    $region33: #{tpu_custom_call.1} parent=1 // pred_fallthru
      _
    // Predicated region
    $region34: #{tpu_custom_call.1} parent=1 // pred_check
      _
    $region35: #{tpu_custom_call.1} parent=1 // pred_check_branch
      %57 = sbr.rel (0) target = $region37
    $region36: #{tpu_custom_call.1} parent=1 // pred_region
      _
    $region37: #{tpu_custom_call.1} parent=1 // pred_fallthru
      _
    // Predicated region
    $region38: #{tpu_custom_call.1} parent=1 // pred_check
      _
    $region39: #{tpu_custom_call.1} parent=1 // pred_check_branch
      %59 = sbr.rel (0) target = $region41
    $region40: #{tpu_custom_call.1} parent=1 // pred_region
      %60 = dma.done [#allocation3], 2048
    $region41: #{tpu_custom_call.1} parent=1 // pred_fallthru
      _
    // Predicated region
    $region42: #{tpu_custom_call.1} parent=1 // pred_check
      _
    $region43: #{tpu_custom_call.1} parent=1 // pred_check_branch
      %62 = sbr.rel (0) target = $region45
    $region44: #{tpu_custom_call.1} parent=1 // pred_region
      %63 = dma.done [#allocation6], 4096
    $region45: #{tpu_custom_call.1} parent=1 // pred_fallthru
      _
    %v64 = vld [vmem:[%s0] sm:$0xff]
    %v65 = vld [vmem:[%s1] sm:$0xff]
    %v66 = vld [vmem:[%s1 + $0x8] sm:$0xff]
    %v67 = vld [vmem:[%s1 + $0x10] sm:$0xff]
    %v68 = vld [vmem:[%s1 + $0x18] sm:$0xff]
    %v69 = vld [vmem:[%s1 + $0x20] sm:$0xff]
    %v70 = vld [vmem:[%s1 + $0x28] sm:$0xff]
    %v71 = vld [vmem:[%s1 + $0x30] sm:$0xff]
    %v72 = vld [vmem:[%s1 + $0x38] sm:$0xff]
    %v73 = vld [vmem:[%s1 + $0x40] sm:$0xff]
    %v74 = vld [vmem:[%s1 + $0x48] sm:$0xff]
    %v75 = vld [vmem:[%s1 + $0x50] sm:$0xff]
    %v76 = vld [vmem:[%s1 + $0x58] sm:$0xff]
    %v77 = vld [vmem:[%s1 + $0x60] sm:$0xff]
    %v78 = vld [vmem:[%s1 + $0x68] sm:$0xff]
    %v79 = vld [vmem:[%s1 + $0x70] sm:$0xff]
    %v80 = vld [vmem:[%s1 + $0x78] sm:$0xff]
    %v81 = vld [vmem:[%s2] sm:$0x1]
    %v83 = vlaneseq
    %v84 = vshrl.u32 %v83, 7
    %v85 = vsub.s32 0, %v84
    %v86 = vrot.slane %v81, %v85
    %88 = vmatprep.subr.mxu0 0.0
    %89 = vmatpush1.msra.mxu0 %v65
    %90 = vmatprep.subr.mxu0 0.0
    %91 = vmatpush1.msra.mxu0 %v66
    %92 = vmatprep.subr.mxu0 0.0
    %93 = vmatpush1.msra.mxu0 %v67
    %94 = vmatprep.subr.mxu0 0.0
    %95 = vmatpush1.msra.mxu0 %v68
    %96 = vmatprep.subr.mxu0 0.0
    %97 = vmatpush1.msra.mxu0 %v69
    %98 = vmatprep.subr.mxu0 0.0
    %99 = vmatpush1.msra.mxu0 %v70
    %100 = vmatprep.subr.mxu0 0.0
    %101 = vmatpush1.msra.mxu0 %v71
    %102 = vmatprep.subr.mxu0 0.0
    %103 = vmatpush1.msra.mxu0 %v72
    %104 = vmatprep.subr.mxu0 0.0
    %105 = vmatpush1.msra.mxu0 %v73
    %106 = vmatprep.subr.mxu0 0.0
    %107 = vmatpush1.msra.mxu0 %v74
    %108 = vmatprep.subr.mxu0 0.0
    %109 = vmatpush1.msra.mxu0 %v75
    %110 = vmatprep.subr.mxu0 0.0
    %111 = vmatpush1.msra.mxu0 %v76
    %112 = vmatprep.subr.mxu0 0.0
    %113 = vmatpush1.msra.mxu0 %v77
    %114 = vmatprep.subr.mxu0 0.0
    %115 = vmatpush1.msra.mxu0 %v78
    %116 = vmatprep.subr.mxu0 0.0
    %117 = vmatpush1.msra.mxu0 %v79
    %118 = vmatprep.subr.mxu0 0.0
    %119 = vmatpush1.msra.mxu0 %v80
    %120 = vmatprep.subr.mxu0 0.0
    %121 = vmatpush1.msra.mxu0 0.0
    %122 = vmatprep.subr.mxu0 0.0
    %123 = vmatpush1.msra.mxu0 0.0
    %124 = vmatprep.subr.mxu0 0.0
    %125 = vmatpush1.msra.mxu0 0.0
    %126 = vmatprep.subr.mxu0 0.0
    %127 = vmatpush1.msra.mxu0 0.0
    %128 = vmatprep.subr.mxu0 0.0
    %129 = vmatpush1.msra.mxu0 0.0
    %130 = vmatprep.subr.mxu0 0.0
    %131 = vmatpush1.msra.mxu0 0.0
    %132 = vmatprep.subr.mxu0 0.0
    %133 = vmatpush1.msra.mxu0 0.0
    %134 = vmatprep.subr.mxu0 0.0
    %135 = vmatpush1.msra.mxu0 0.0
    %136 = vmatprep.subr.mxu0 0.0
    %137 = vmatpush1.msra.mxu0 0.0
    %138 = vmatprep.subr.mxu0 0.0
    %139 = vmatpush1.msra.mxu0 0.0
    %140 = vmatprep.subr.mxu0 0.0
    %141 = vmatpush1.msra.mxu0 0.0
    %142 = vmatprep.subr.mxu0 0.0
    %143 = vmatpush1.msra.mxu0 0.0
    %144 = vmatprep.subr.mxu0 0.0
    %145 = vmatpush1.msra.mxu0 0.0
    %146 = vmatprep.subr.mxu0 0.0
    %147 = vmatpush1.msra.mxu0 0.0
    %148 = vmatprep.subr.mxu0 0.0
    %149 = vmatpush1.msra.mxu0 0.0
    %150 = vmatprep.subr.mxu0 0.0
    %151 = vmatpush1.msra.mxu0 0.0
    %152 = vmatprep.mubr.f32.mxu0 0.0
    %153 = vmatmul.mubr.f32.gmra.mrb[0].mxu0 %v64
    %v154 = vpop.f32.mrb[0].mxu0
    %v155 = vadd.f32 %v86, %v154
    %v156 = vpop.f32.mrb[0].mxu0
    %157 = vdwg.mxu0
    %v158 = vtanh.pop %v155
    %v159 = vld [vmem:[#allocation2] sm:$0xff]
    %v160 = vld [vmem:[#allocation2 + $0x8] sm:$0xff]
    %v161 = vld [vmem:[#allocation2 + $0x10] sm:$0xff]
    %v162 = vld [vmem:[#allocation2 + $0x18] sm:$0xff]
    %v163 = vld [vmem:[#allocation2 + $0x20] sm:$0xff]
    %v164 = vld [vmem:[#allocation2 + $0x28] sm:$0xff]
    %v165 = vld [vmem:[#allocation2 + $0x30] sm:$0xff]
    %v166 = vld [vmem:[#allocation2 + $0x38] sm:$0xff]
    %v167 = vld [vmem:[#allocation2 + $0x40] sm:$0xff]
    %v168 = vld [vmem:[#allocation2 + $0x48] sm:$0xff]
    %v169 = vld [vmem:[#allocation2 + $0x50] sm:$0xff]
    %v170 = vld [vmem:[#allocation2 + $0x58] sm:$0xff]
    %v171 = vld [vmem:[#allocation2 + $0x60] sm:$0xff]
    %v172 = vld [vmem:[#allocation2 + $0x68] sm:$0xff]
    %v173 = vld [vmem:[#allocation2 + $0x70] sm:$0xff]
    %v174 = vld [vmem:[#allocation2 + $0x78] sm:$0xff]
    %v175 = vld [vmem:[%s4] sm:$0x1]
    %v177 = vlaneseq
    %v178 = vshrl.u32 %v177, 7
    %v179 = vsub.s32 0, %v178
    %v180 = vrot.slane %v175, %v179
    %182 = vmatprep.subr.mxu0 0.0
    %183 = vmatpush1.msra.mxu0 %v159
    %184 = vmatprep.subr.mxu0 0.0
    %185 = vmatpush1.msra.mxu0 %v160
    %186 = vmatprep.subr.mxu0 0.0
    %187 = vmatpush1.msra.mxu0 %v161
    %188 = vmatprep.subr.mxu0 0.0
    %189 = vmatpush1.msra.mxu0 %v162
    %190 = vmatprep.subr.mxu0 0.0
    %191 = vmatpush1.msra.mxu0 %v163
    %192 = vmatprep.subr.mxu0 0.0
    %193 = vmatpush1.msra.mxu0 %v164
    %194 = vmatprep.subr.mxu0 0.0
    %195 = vmatpush1.msra.mxu0 %v165
    %196 = vmatprep.subr.mxu0 0.0
    %197 = vmatpush1.msra.mxu0 %v166
    %198 = vmatprep.subr.mxu0 0.0
    %199 = vmatpush1.msra.mxu0 %v167
    %200 = vmatprep.subr.mxu0 0.0
    %201 = vmatpush1.msra.mxu0 %v168
    %202 = vmatprep.subr.mxu0 0.0
    %203 = vmatpush1.msra.mxu0 %v169
    %204 = vmatprep.subr.mxu0 0.0
    %205 = vmatpush1.msra.mxu0 %v170
    %206 = vmatprep.subr.mxu0 0.0
    %207 = vmatpush1.msra.mxu0 %v171
    %208 = vmatprep.subr.mxu0 0.0
    %209 = vmatpush1.msra.mxu0 %v172
    %210 = vmatprep.subr.mxu0 0.0
    %211 = vmatpush1.msra.mxu0 %v173
    %212 = vmatprep.subr.mxu0 0.0
    %213 = vmatpush1.msra.mxu0 %v174
    %214 = vmatprep.subr.mxu0 0.0
    %215 = vmatpush1.msra.mxu0 0.0
    %216 = vmatprep.subr.mxu0 0.0
    %217 = vmatpush1.msra.mxu0 0.0
    %218 = vmatprep.subr.mxu0 0.0
    %219 = vmatpush1.msra.mxu0 0.0
    %220 = vmatprep.subr.mxu0 0.0
    %221 = vmatpush1.msra.mxu0 0.0
    %222 = vmatprep.subr.mxu0 0.0
    %223 = vmatpush1.msra.mxu0 0.0
    %224 = vmatprep.subr.mxu0 0.0
    %225 = vmatpush1.msra.mxu0 0.0
    %226 = vmatprep.subr.mxu0 0.0
    %227 = vmatpush1.msra.mxu0 0.0
    %228 = vmatprep.subr.mxu0 0.0
    %229 = vmatpush1.msra.mxu0 0.0
    %230 = vmatprep.subr.mxu0 0.0
    %231 = vmatpush1.msra.mxu0 0.0
    %232 = vmatprep.subr.mxu0 0.0
    %233 = vmatpush1.msra.mxu0 0.0
    %234 = vmatprep.subr.mxu0 0.0
    %235 = vmatpush1.msra.mxu0 0.0
    %236 = vmatprep.subr.mxu0 0.0
    %237 = vmatpush1.msra.mxu0 0.0
    %238 = vmatprep.subr.mxu0 0.0
    %239 = vmatpush1.msra.mxu0 0.0
    %240 = vmatprep.subr.mxu0 0.0
    %241 = vmatpush1.msra.mxu0 0.0
    %242 = vmatprep.subr.mxu0 0.0
    %243 = vmatpush1.msra.mxu0 0.0
    %244 = vmatprep.subr.mxu0 0.0
    %245 = vmatpush1.msra.mxu0 0.0
    %246 = vmatprep.mubr.f32.mxu0 0.0
    %247 = vmatmul.mubr.f32.gmra.mrb[0].mxu0 %v158
    %v248 = vpop.f32.mrb[0].mxu0
    %v249 = vadd.f32 %v180, %v248
    %v250 = vpop.f32.mrb[0].mxu0
    %251 = vdwg.mxu0
    %v252 = vtanh.pop %v249
    %v253 = vld [vmem:[#allocation5] sm:$0xff]
    %v254 = vld [vmem:[#allocation5 + $0x8] sm:$0xff]
    %v255 = vld [vmem:[#allocation5 + $0x10] sm:$0xff]
    %v256 = vld [vmem:[#allocation5 + $0x18] sm:$0xff]
    %v257 = vld [vmem:[#allocation5 + $0x20] sm:$0xff]
    %v258 = vld [vmem:[#allocation5 + $0x28] sm:$0xff]
    %v259 = vld [vmem:[#allocation5 + $0x30] sm:$0xff]
    %v260 = vld [vmem:[#allocation5 + $0x38] sm:$0xff]
    %v261 = vld [vmem:[#allocation5 + $0x40] sm:$0xff]
    %v262 = vld [vmem:[#allocation5 + $0x48] sm:$0xff]
    %v263 = vld [vmem:[#allocation5 + $0x50] sm:$0xff]
    %v264 = vld [vmem:[#allocation5 + $0x58] sm:$0xff]
    %v265 = vld [vmem:[#allocation5 + $0x60] sm:$0xff]
    %v266 = vld [vmem:[#allocation5 + $0x68] sm:$0xff]
    %v267 = vld [vmem:[#allocation5 + $0x70] sm:$0xff]
    %v268 = vld [vmem:[#allocation5 + $0x78] sm:$0xff]
    %v269 = vld [vmem:[#allocation5 + $0x80] sm:$0xff]
    %v270 = vld [vmem:[#allocation5 + $0x88] sm:$0xff]
    %v271 = vld [vmem:[#allocation5 + $0x90] sm:$0xff]
    %v272 = vld [vmem:[#allocation5 + $0x98] sm:$0xff]
    %v273 = vld [vmem:[#allocation5 + $0xa0] sm:$0xff]
    %v274 = vld [vmem:[#allocation5 + $0xa8] sm:$0xff]
    %v275 = vld [vmem:[#allocation5 + $0xb0] sm:$0xff]
    %v276 = vld [vmem:[#allocation5 + $0xb8] sm:$0xff]
    %v277 = vld [vmem:[#allocation5 + $0xc0] sm:$0xff]
    %v278 = vld [vmem:[#allocation5 + $0xc8] sm:$0xff]
    %v279 = vld [vmem:[#allocation5 + $0xd0] sm:$0xff]
    %v280 = vld [vmem:[#allocation5 + $0xd8] sm:$0xff]
    %v281 = vld [vmem:[#allocation5 + $0xe0] sm:$0xff]
    %v282 = vld [vmem:[#allocation5 + $0xe8] sm:$0xff]
    %v283 = vld [vmem:[#allocation5 + $0xf0] sm:$0xff]
    %v284 = vld [vmem:[#allocation5 + $0xf8] sm:$0xff]
    %v285 = vld [vmem:[%s6] sm:$0x3]
    %v287 = vlaneseq
    %v288 = vshrl.u32 %v287, 7
    %v289 = vsub.s32 0, %v288
    %v290 = vrot.slane %v285, %v289
    %v291 = vlaneseq
    %v292 = vshrl.u32 %v291, 7
    %v293 = vsub.s32 1, %v292
    %v294 = vrot.slane %v285, %v293
    %297 = vmatprep.subr.mxu0 %v254
    %298 = vmatpush1.msra.mxu0 %v253
    %299 = vmatprep.subr.mxu0 %v256
    %300 = vmatpush1.msra.mxu0 %v255
    %301 = vmatprep.subr.mxu0 %v258
    %302 = vmatpush1.msra.mxu0 %v257
    %303 = vmatprep.subr.mxu0 %v260
    %304 = vmatpush1.msra.mxu0 %v259
    %305 = vmatprep.subr.mxu0 %v262
    %306 = vmatpush1.msra.mxu0 %v261
    %307 = vmatprep.subr.mxu0 %v264
    %308 = vmatpush1.msra.mxu0 %v263
    %309 = vmatprep.subr.mxu0 %v266
    %310 = vmatpush1.msra.mxu0 %v265
    %311 = vmatprep.subr.mxu0 %v268
    %312 = vmatpush1.msra.mxu0 %v267
    %313 = vmatprep.subr.mxu0 %v270
    %314 = vmatpush1.msra.mxu0 %v269
    %315 = vmatprep.subr.mxu0 %v272
    %316 = vmatpush1.msra.mxu0 %v271
    %317 = vmatprep.subr.mxu0 %v274
    %318 = vmatpush1.msra.mxu0 %v273
    %319 = vmatprep.subr.mxu0 %v276
    %320 = vmatpush1.msra.mxu0 %v275
    %321 = vmatprep.subr.mxu0 %v278
    %322 = vmatpush1.msra.mxu0 %v277
    %323 = vmatprep.subr.mxu0 %v280
    %324 = vmatpush1.msra.mxu0 %v279
    %325 = vmatprep.subr.mxu0 %v282
    %326 = vmatpush1.msra.mxu0 %v281
    %327 = vmatprep.subr.mxu0 %v284
    %328 = vmatpush1.msra.mxu0 %v283
    %329 = vmatprep.subr.mxu0 0.0
    %330 = vmatpush1.msra.mxu0 0.0
    %331 = vmatprep.subr.mxu0 0.0
    %332 = vmatpush1.msra.mxu0 0.0
    %333 = vmatprep.subr.mxu0 0.0
    %334 = vmatpush1.msra.mxu0 0.0
    %335 = vmatprep.subr.mxu0 0.0
    %336 = vmatpush1.msra.mxu0 0.0
    %337 = vmatprep.subr.mxu0 0.0
    %338 = vmatpush1.msra.mxu0 0.0
    %339 = vmatprep.subr.mxu0 0.0
    %340 = vmatpush1.msra.mxu0 0.0
    %341 = vmatprep.subr.mxu0 0.0
    %342 = vmatpush1.msra.mxu0 0.0
    %343 = vmatprep.subr.mxu0 0.0
    %344 = vmatpush1.msra.mxu0 0.0
    %345 = vmatprep.subr.mxu0 0.0
    %346 = vmatpush1.msra.mxu0 0.0
    %347 = vmatprep.subr.mxu0 0.0
    %348 = vmatpush1.msra.mxu0 0.0
    %349 = vmatprep.subr.mxu0 0.0
    %350 = vmatpush1.msra.mxu0 0.0
    %351 = vmatprep.subr.mxu0 0.0
    %352 = vmatpush1.msra.mxu0 0.0
    %353 = vmatprep.subr.mxu0 0.0
    %354 = vmatpush1.msra.mxu0 0.0
    %355 = vmatprep.subr.mxu0 0.0
    %356 = vmatpush1.msra.mxu0 0.0
    %357 = vmatprep.subr.mxu0 0.0
    %358 = vmatpush1.msra.mxu0 0.0
    %359 = vmatprep.subr.mxu0 0.0
    %360 = vmatpush1.msra.mxu0 0.0
    %361 = vmatprep.mubr.f32.mxu0 0.0
    %362 = vmatmul.mubr.f32.gmra.mrb[0].mxu0 %v252
    %v363 = vpop.f32.mrb[0].mxu0
    %v364 = vadd.f32 %v290, %v363
    %v365 = vpop.f32.mrb[0].mxu0
    %v366 = vadd.f32 %v294, %v365
    %367 = vdwg.mxu0
    %368 = vst [vmem:[#allocation7] sm:$0xff] %v364
    %369 = vst [vmem:[#allocation7 + $0x8] sm:$0xff] %v366
    %v370 = vld [vmem:[%s7] sm:$0xff]
    %v371 = vld [vmem:[%s7 + $0x8] sm:$0xff]
    %v372 = vld [vmem:[%s7 + $0x10] sm:$0xff]
    %v373 = vld [vmem:[%s7 + $0x18] sm:$0xff]
    %v374 = vld [vmem:[%s7 + $0x20] sm:$0xff]
    %v375 = vld [vmem:[%s7 + $0x28] sm:$0xff]
    %v376 = vld [vmem:[%s7 + $0x30] sm:$0xff]
    %v377 = vld [vmem:[%s7 + $0x38] sm:$0xff]
    %v378 = vld [vmem:[%s7 + $0x40] sm:$0xff]
    %v379 = vld [vmem:[%s7 + $0x48] sm:$0xff]
    %v380 = vld [vmem:[%s7 + $0x50] sm:$0xff]
    %v381 = vld [vmem:[%s7 + $0x58] sm:$0xff]
    %v382 = vld [vmem:[%s7 + $0x60] sm:$0xff]
    %v383 = vld [vmem:[%s7 + $0x68] sm:$0xff]
    %v384 = vld [vmem:[%s7 + $0x70] sm:$0xff]
    %v385 = vld [vmem:[%s7 + $0x78] sm:$0xff]
    %v386 = vld [vmem:[%s8] sm:$0x1]
    %v388 = vlaneseq
    %v389 = vshrl.u32 %v388, 7
    %v390 = vsub.s32 0, %v389
    %v391 = vrot.slane %v386, %v390
    %393 = vmatprep.subr.mxu0 0.0
    %394 = vmatpush1.msra.mxu0 %v370
    %395 = vmatprep.subr.mxu0 0.0
    %396 = vmatpush1.msra.mxu0 %v371
    %397 = vmatprep.subr.mxu0 0.0
    %398 = vmatpush1.msra.mxu0 %v372
    %399 = vmatprep.subr.mxu0 0.0
    %400 = vmatpush1.msra.mxu0 %v373
    %401 = vmatprep.subr.mxu0 0.0
    %402 = vmatpush1.msra.mxu0 %v374
    %403 = vmatprep.subr.mxu0 0.0
    %404 = vmatpush1.msra.mxu0 %v375
    %405 = vmatprep.subr.mxu0 0.0
    %406 = vmatpush1.msra.mxu0 %v376
    %407 = vmatprep.subr.mxu0 0.0
    %408 = vmatpush1.msra.mxu0 %v377
    %409 = vmatprep.subr.mxu0 0.0
    %410 = vmatpush1.msra.mxu0 %v378
    %411 = vmatprep.subr.mxu0 0.0
    %412 = vmatpush1.msra.mxu0 %v379
    %413 = vmatprep.subr.mxu0 0.0
    %414 = vmatpush1.msra.mxu0 %v380
    %415 = vmatprep.subr.mxu0 0.0
    %416 = vmatpush1.msra.mxu0 %v381
    %417 = vmatprep.subr.mxu0 0.0
    %418 = vmatpush1.msra.mxu0 %v382
    %419 = vmatprep.subr.mxu0 0.0
    %420 = vmatpush1.msra.mxu0 %v383
    %421 = vmatprep.subr.mxu0 0.0
    %422 = vmatpush1.msra.mxu0 %v384
    %423 = vmatprep.subr.mxu0 0.0
    %424 = vmatpush1.msra.mxu0 %v385
    %425 = vmatprep.subr.mxu0 0.0
    %426 = vmatpush1.msra.mxu0 0.0
    %427 = vmatprep.subr.mxu0 0.0
    %428 = vmatpush1.msra.mxu0 0.0
    %429 = vmatprep.subr.mxu0 0.0
    %430 = vmatpush1.msra.mxu0 0.0
    %431 = vmatprep.subr.mxu0 0.0
    %432 = vmatpush1.msra.mxu0 0.0
    %433 = vmatprep.subr.mxu0 0.0
    %434 = vmatpush1.msra.mxu0 0.0
    %435 = vmatprep.subr.mxu0 0.0
    %436 = vmatpush1.msra.mxu0 0.0
    %437 = vmatprep.subr.mxu0 0.0
    %438 = vmatpush1.msra.mxu0 0.0
    %439 = vmatprep.subr.mxu0 0.0
    %440 = vmatpush1.msra.mxu0 0.0
    %441 = vmatprep.subr.mxu0 0.0
    %442 = vmatpush1.msra.mxu0 0.0
    %443 = vmatprep.subr.mxu0 0.0
    %444 = vmatpush1.msra.mxu0 0.0
    %445 = vmatprep.subr.mxu0 0.0
    %446 = vmatpush1.msra.mxu0 0.0
    %447 = vmatprep.subr.mxu0 0.0
    %448 = vmatpush1.msra.mxu0 0.0
    %449 = vmatprep.subr.mxu0 0.0
    %450 = vmatpush1.msra.mxu0 0.0
    %451 = vmatprep.subr.mxu0 0.0
    %452 = vmatpush1.msra.mxu0 0.0
    %453 = vmatprep.subr.mxu0 0.0
    %454 = vmatpush1.msra.mxu0 0.0
    %455 = vmatprep.subr.mxu0 0.0
    %456 = vmatpush1.msra.mxu0 0.0
    %457 = vmatprep.mubr.f32.mxu0 0.0
    %458 = vmatmul.mubr.f32.gmra.mrb[0].mxu0 %v252
    %v459 = vpop.f32.mrb[0].mxu0
    %v460 = vadd.f32 %v391, %v459
    %v461 = vpop.f32.mrb[0].mxu0
    %462 = vdwg.mxu0
    %vm463 = vcmask 261120
    %464 = vst.msk [vmem:[#allocation8] sm:$0xff] %vm463, %v460
    // Predicated region
    $region46: #{tpu_custom_call.1} parent=1 // pred_check
      _
    $region47: #{tpu_custom_call.1} parent=1 // pred_check_branch
      %466 = sbr.rel (0) target = $region49
    $region48: #{tpu_custom_call.1} parent=1 // pred_region
      %s468 = ssub.s32 256, 256
      %469 = vsyncadd [#allocation4], %s468
      %s471 = sshll.u32 [#allocation7], 4
      %s472 = int_to_ptr.vmem [resolvable:$true] %s471
      %474 = dma.vmem_to_hbm [thread:$0]  %s472, 256, %s9, [#allocation4]
    $region49: #{tpu_custom_call.1} parent=1 // pred_fallthru
      _
    // Predicated region
    $region50: #{tpu_custom_call.1} parent=1 // pred_check
      _
    $region51: #{tpu_custom_call.1} parent=1 // pred_check_branch
      %476 = sbr.rel (0) target = $region53
    $region52: #{tpu_custom_call.1} parent=1 // pred_region
      %s478 = ssub.s32 128, 128
      %479 = vsyncadd [#allocation9], %s478
      %s481 = sshll.u32 [#allocation8], 4
      %s482 = int_to_ptr.vmem [resolvable:$true] %s481
      %484 = dma.vmem_to_hbm [thread:$0]  %s482, 128, %s10, [#allocation9]
    $region53: #{tpu_custom_call.1} parent=1 // pred_fallthru
      _
    // Predicated region
    $region54: #{tpu_custom_call.1} parent=1 // pred_check
      _
    $region55: #{tpu_custom_call.1} parent=1 // pred_check_branch
      %486 = sbr.rel (0) target = $region57
    $region56: #{tpu_custom_call.1} parent=1 // pred_region
      %487 = dma.done [#allocation4], 256
    $region57: #{tpu_custom_call.1} parent=1 // pred_fallthru
      _
    // Predicated region
    $region58: #{tpu_custom_call.1} parent=1 // pred_check
      _
    $region59: #{tpu_custom_call.1} parent=1 // pred_check_branch
      %489 = sbr.rel (0) target = $region61
    $region60: #{tpu_custom_call.1} parent=1 // pred_region
      %490 = dma.done [#allocation9], 128
    $region61: #{tpu_custom_call.1} parent=1 // pred_fallthru
      _
    %491 = vsyncpa [#allocation3], 1
    %492 = vsyncpa [#allocation6], 1
    %493 = vsyncpa [#allocation4], 1
    %494 = vsyncpa [#allocation9], 1

// kernel: tpu_custom_call.1
$region0: #{tpu_custom_call.1}
  #allocation0 [shape = 'u32[]', space=smem, size = 0x4, offset = 0x4, fixed_abs, tag = 'smem constant byte address 0x4 - core index']
  #allocation1 [shape = 'u32[144,128]{1,0:T(1,128)}', space=vmem, size = 0x12000, scoped, tag = 'internal scratch']
  %s0 = inlined_call_operand.vmem [shape: f32[8,128], index: 0, kind: input, shape index: {}]
  %s1 = inlined_call_operand.vmem [shape: f32[128,128], index: 1, kind: input, shape index: {}]
  %s2 = inlined_call_operand.vmem [shape: f32[1,128], index: 2, kind: input, shape index: {}]
  %s3 = inlined_call_operand.hbm [shape: f32[128,128], index: 3, kind: input, shape index: {}]
  %s4 = inlined_call_operand.vmem [shape: f32[1,128], index: 4, kind: input, shape index: {}]
  %s5 = inlined_call_operand.hbm [shape: f32[128,256], index: 5, kind: input, shape index: {}]
  %s6 = inlined_call_operand.vmem [shape: f32[1,256], index: 6, kind: input, shape index: {}]
  %s7 = inlined_call_operand.vmem [shape: f32[128,32], index: 7, kind: input, shape index: {}]
  %s8 = inlined_call_operand.vmem [shape: f32[1,32], index: 8, kind: input, shape index: {}]
  %s9 = inlined_call_operand.hbm [shape: f32[8,256], index: 9, kind: output, shape index: {0}]
  %s10 = inlined_call_operand.hbm [shape: f32[8,32], index: 10, kind: output, shape index: {1}]
  %11 = xla_tuple %s9, %s10
  %s12 = sld [smem:[#allocation0]]
  $region62: #{tpu_custom_call.1} parent=0
    _
  %s14 = ssub.s32 1, %s12
  %s15 = scalar_select 0, %s14, %s12
  $region1: #{tpu_custom_call.1} parent=0
    #allocation2 [shape = 'u8[65536]{0}', space=vmem, size = 0x10000, scoped, tag = 'input window, operand 3, single buffered']
    #allocation3 [shape = 's32[1]{0}', space=sflag, size = 0x4, scoped, tag = 'scoped memory for tpu_custom_call.1']
    #allocation4 [shape = 's32[1]{0}', space=sflag, size = 0x4, scoped, tag = 'scoped memory for tpu_custom_call.1']
    #allocation5 [shape = 'u8[131072]{0}', space=vmem, size = 0x20000, scoped, tag = 'input window, operand 5, single buffered']
    #allocation6 [shape = 's32[1]{0}', space=sflag, size = 0x4, scoped, tag = 'scoped memory for tpu_custom_call.1']
    #allocation7 [shape = 'u8[8192]{0}', space=vmem, size = 0x2000, scoped, tag = 'output window, operand 0, single buffered']
    #allocation8 [shape = 'u8[4096]{0}', space=vmem, size = 0x1000, scoped, tag = 'output window, operand 1, single buffered']
    #allocation9 [shape = 's32[1]{0}', space=sflag, size = 0x4, scoped, tag = 'scoped memory for tpu_custom_call.1']
    %16 = vsyncpa [#allocation3], 0
    %17 = vsyncpa [#allocation6], 0
    %18 = vsyncpa [#allocation4], 0
    %19 = vsyncpa [#allocation9], 0
    // Predicated region
    $region2: #{tpu_custom_call.1} parent=1 // pred_check
      _
    $region3: #{tpu_custom_call.1} parent=1 // pred_check_branch
      %21 = sbr.rel (0) target = $region5
    $region4: #{tpu_custom_call.1} parent=1 // pred_region
      _
    $region5: #{tpu_custom_call.1} parent=1 // pred_fallthru
      _
    // Predicated region
    $region6: #{tpu_custom_call.1} parent=1 // pred_check
      _
    $region7: #{tpu_custom_call.1} parent=1 // pred_check_branch
      %23 = sbr.rel (0) target = $region9
    $region8: #{tpu_custom_call.1} parent=1 // pred_region
      _
    $region9: #{tpu_custom_call.1} parent=1 // pred_fallthru
      _
    // Predicated region
    $region10: #{tpu_custom_call.1} parent=1 // pred_check
      _
    $region11: #{tpu_custom_call.1} parent=1 // pred_check_branch
      %25 = sbr.rel (0) target = $region13
    $region12: #{tpu_custom_call.1} parent=1 // pred_region
      _
    $region13: #{tpu_custom_call.1} parent=1 // pred_fallthru
      _
    // Predicated region
    $region14: #{tpu_custom_call.1} parent=1 // pred_check
      _
    $region15: #{tpu_custom_call.1} parent=1 // pred_check_branch
      %27 = sbr.rel (0) target = $region17
    $region16: #{tpu_custom_call.1} parent=1 // pred_region
      %s29 = ssub.s32 2048, 2048
      %30 = vsyncadd [#allocation3], %s29
      %s31 = sshll.u32 [#allocation2], 4
      %s32 = int_to_ptr.vmem [resolvable:$true] %s31
      %37 = dma.hbm_to_vmem [thread:$0]  %s3, 2048, %s32, [#allocation3], 128, 128, 8
    $region17: #{tpu_custom_call.1} parent=1 // pred_fallthru
      _
    // Predicated region
    $region18: #{tpu_custom_call.1} parent=1 // pred_check
      _
    $region19: #{tpu_custom_call.1} parent=1 // pred_check_branch
      %39 = sbr.rel (0) target = $region21
    $region20: #{tpu_custom_call.1} parent=1 // pred_region
      _
    $region21: #{tpu_custom_call.1} parent=1 // pred_fallthru
      _
    // Predicated region
    $region22: #{tpu_custom_call.1} parent=1 // pred_check
      _
    $region23: #{tpu_custom_call.1} parent=1 // pred_check_branch
      %41 = sbr.rel (0) target = $region25
    $region24: #{tpu_custom_call.1} parent=1 // pred_region
      %s43 = ssub.s32 4096, 4096
      %44 = vsyncadd [#allocation6], %s43
      %s45 = sshll.u32 [#allocation5], 4
      %s46 = int_to_ptr.vmem [resolvable:$true] %s45
      %51 = dma.hbm_to_vmem [thread:$0]  %s5, 4096, %s46, [#allocation6], 256, 256, 16
    $region25: #{tpu_custom_call.1} parent=1 // pred_fallthru
      _
    // Predicated region
    $region26: #{tpu_custom_call.1} parent=1 // pred_check
      _
    $region27: #{tpu_custom_call.1} parent=1 // pred_check_branch
      %53 = sbr.rel (0) target = $region29
    $region28: #{tpu_custom_call.1} parent=1 // pred_region
      _
    $region29: #{tpu_custom_call.1} parent=1 // pred_fallthru
      _
    // Predicated region
    $region30: #{tpu_custom_call.1} parent=1 // pred_check
      _
    $region31: #{tpu_custom_call.1} parent=1 // pred_check_branch
      %55 = sbr.rel (0) target = $region33
    $region32: #{tpu_custom_call.1} parent=1 // pred_region
      _
    $region33: #{tpu_custom_call.1} parent=1 // pred_fallthru
      _
    // Predicated region
    $region34: #{tpu_custom_call.1} parent=1 // pred_check
      _
    $region35: #{tpu_custom_call.1} parent=1 // pred_check_branch
      %57 = sbr.rel (0) target = $region37
    $region36: #{tpu_custom_call.1} parent=1 // pred_region
      _
    $region37: #{tpu_custom_call.1} parent=1 // pred_fallthru
      _
    // Predicated region
    $region38: #{tpu_custom_call.1} parent=1 // pred_check
      _
    $region39: #{tpu_custom_call.1} parent=1 // pred_check_branch
      %59 = sbr.rel (0) target = $region41
    $region40: #{tpu_custom_call.1} parent=1 // pred_region
      %60 = dma.done [#allocation3], 2048
    $region41: #{tpu_custom_call.1} parent=1 // pred_fallthru
      _
    // Predicated region
    $region42: #{tpu_custom_call.1} parent=1 // pred_check
      _
    $region43: #{tpu_custom_call.1} parent=1 // pred_check_branch
      %62 = sbr.rel (0) target = $region45
    $region44: #{tpu_custom_call.1} parent=1 // pred_region
      %63 = dma.done [#allocation6], 4096
    $region45: #{tpu_custom_call.1} parent=1 // pred_fallthru
      _
    %v64 = vld [vmem:[%s0] sm:$0xff]
    %v65 = vld [vmem:[%s1] sm:$0xff]
    %v66 = vld [vmem:[%s1 + $0x8] sm:$0xff]
    %v67 = vld [vmem:[%s1 + $0x10] sm:$0xff]
    %v68 = vld [vmem:[%s1 + $0x18] sm:$0xff]
    %v69 = vld [vmem:[%s1 + $0x20] sm:$0xff]
    %v70 = vld [vmem:[%s1 + $0x28] sm:$0xff]
    %v71 = vld [vmem:[%s1 + $0x30] sm:$0xff]
    %v72 = vld [vmem:[%s1 + $0x38] sm:$0xff]
    %v73 = vld [vmem:[%s1 + $0x40] sm:$0xff]
    %v74 = vld [vmem:[%s1 + $0x48] sm:$0xff]
    %v75 = vld [vmem:[%s1 + $0x50] sm:$0xff]
    %v76 = vld [vmem:[%s1 + $0x58] sm:$0xff]
    %v77 = vld [vmem:[%s1 + $0x60] sm:$0xff]
    %v78 = vld [vmem:[%s1 + $0x68] sm:$0xff]
    %v79 = vld [vmem:[%s1 + $0x70] sm:$0xff]
    %v80 = vld [vmem:[%s1 + $0x78] sm:$0xff]
    %v81 = vld [vmem:[%s2] sm:$0x1]
    %v83 = vlaneseq
    %v84 = vshrl.u32 %v83, 7
    %v85 = vsub.s32 0, %v84
    %v86 = vrot.slane %v81, %v85
    %88 = vmatprep.subr.mxu0 0.0
    %89 = vmatpush1.msra.mxu0 %v65
    %90 = vmatprep.subr.mxu0 0.0
    %91 = vmatpush1.msra.mxu0 %v66
    %92 = vmatprep.subr.mxu0 0.0
    %93 = vmatpush1.msra.mxu0 %v67
    %94 = vmatprep.subr.mxu0 0.0
    %95 = vmatpush1.msra.mxu0 %v68
    %96 = vmatprep.subr.mxu0 0.0
    %97 = vmatpush1.msra.mxu0 %v69
    %98 = vmatprep.subr.mxu0 0.0
    %99 = vmatpush1.msra.mxu0 %v70
    %100 = vmatprep.subr.mxu0 0.0
    %101 = vmatpush1.msra.mxu0 %v71
    %102 = vmatprep.subr.mxu0 0.0
    %103 = vmatpush1.msra.mxu0 %v72
    %104 = vmatprep.subr.mxu0 0.0
    %105 = vmatpush1.msra.mxu0 %v73
    %106 = vmatprep.subr.mxu0 0.0
    %107 = vmatpush1.msra.mxu0 %v74
    %108 = vmatprep.subr.mxu0 0.0
    %109 = vmatpush1.msra.mxu0 %v75
    %110 = vmatprep.subr.mxu0 0.0
    %111 = vmatpush1.msra.mxu0 %v76
    %112 = vmatprep.subr.mxu0 0.0
    %113 = vmatpush1.msra.mxu0 %v77
    %114 = vmatprep.subr.mxu0 0.0
    %115 = vmatpush1.msra.mxu0 %v78
    %116 = vmatprep.subr.mxu0 0.0
    %117 = vmatpush1.msra.mxu0 %v79
    %118 = vmatprep.subr.mxu0 0.0
    %119 = vmatpush1.msra.mxu0 %v80
    %120 = vmatprep.subr.mxu0 0.0
    %121 = vmatpush1.msra.mxu0 0.0
    %122 = vmatprep.subr.mxu0 0.0
    %123 = vmatpush1.msra.mxu0 0.0
    %124 = vmatprep.subr.mxu0 0.0
    %125 = vmatpush1.msra.mxu0 0.0
    %126 = vmatprep.subr.mxu0 0.0
    %127 = vmatpush1.msra.mxu0 0.0
    %128 = vmatprep.subr.mxu0 0.0
    %129 = vmatpush1.msra.mxu0 0.0
    %130 = vmatprep.subr.mxu0 0.0
    %131 = vmatpush1.msra.mxu0 0.0
    %132 = vmatprep.subr.mxu0 0.0
    %133 = vmatpush1.msra.mxu0 0.0
    %134 = vmatprep.subr.mxu0 0.0
    %135 = vmatpush1.msra.mxu0 0.0
    %136 = vmatprep.subr.mxu0 0.0
    %137 = vmatpush1.msra.mxu0 0.0
    %138 = vmatprep.subr.mxu0 0.0
    %139 = vmatpush1.msra.mxu0 0.0
    %140 = vmatprep.subr.mxu0 0.0
    %141 = vmatpush1.msra.mxu0 0.0
    %142 = vmatprep.subr.mxu0 0.0
    %143 = vmatpush1.msra.mxu0 0.0
    %144 = vmatprep.subr.mxu0 0.0
    %145 = vmatpush1.msra.mxu0 0.0
    %146 = vmatprep.subr.mxu0 0.0
    %147 = vmatpush1.msra.mxu0 0.0
    %148 = vmatprep.subr.mxu0 0.0
    %149 = vmatpush1.msra.mxu0 0.0
    %150 = vmatprep.subr.mxu0 0.0
    %151 = vmatpush1.msra.mxu0 0.0
    %152 = vmatprep.mubr.f32.mxu0 0.0
    %153 = vmatmul.mubr.f32.gmra.mrb[0].mxu0 %v64
    %v154 = vpop.f32.mrb[0].mxu0
    %v155 = vadd.f32 %v86, %v154
    %v156 = vpop.f32.mrb[0].mxu0
    %157 = vdwg.mxu0
    %v158 = vtanh.pop %v155
    %v159 = vld [vmem:[#allocation2] sm:$0xff]
    %v160 = vld [vmem:[#allocation2 + $0x8] sm:$0xff]
    %v161 = vld [vmem:[#allocation2 + $0x10] sm:$0xff]
    %v162 = vld [vmem:[#allocation2 + $0x18] sm:$0xff]
    %v163 = vld [vmem:[#allocation2 + $0x20] sm:$0xff]
    %v164 = vld [vmem:[#allocation2 + $0x28] sm:$0xff]
    %v165 = vld [vmem:[#allocation2 + $0x30] sm:$0xff]
    %v166 = vld [vmem:[#allocation2 + $0x38] sm:$0xff]
    %v167 = vld [vmem:[#allocation2 + $0x40] sm:$0xff]
    %v168 = vld [vmem:[#allocation2 + $0x48] sm:$0xff]
    %v169 = vld [vmem:[#allocation2 + $0x50] sm:$0xff]
    %v170 = vld [vmem:[#allocation2 + $0x58] sm:$0xff]
    %v171 = vld [vmem:[#allocation2 + $0x60] sm:$0xff]
    %v172 = vld [vmem:[#allocation2 + $0x68] sm:$0xff]
    %v173 = vld [vmem:[#allocation2 + $0x70] sm:$0xff]
    %v174 = vld [vmem:[#allocation2 + $0x78] sm:$0xff]
    %v175 = vld [vmem:[%s4] sm:$0x1]
    %v177 = vlaneseq
    %v178 = vshrl.u32 %v177, 7
    %v179 = vsub.s32 0, %v178
    %v180 = vrot.slane %v175, %v179
    %182 = vmatprep.subr.mxu0 0.0
    %183 = vmatpush1.msra.mxu0 %v159
    %184 = vmatprep.subr.mxu0 0.0
    %185 = vmatpush1.msra.mxu0 %v160
    %186 = vmatprep.subr.mxu0 0.0
    %187 = vmatpush1.msra.mxu0 %v161
    %188 = vmatprep.subr.mxu0 0.0
    %189 = vmatpush1.msra.mxu0 %v162
    %190 = vmatprep.subr.mxu0 0.0
    %191 = vmatpush1.msra.mxu0 %v163
    %192 = vmatprep.subr.mxu0 0.0
    %193 = vmatpush1.msra.mxu0 %v164
    %194 = vmatprep.subr.mxu0 0.0
    %195 = vmatpush1.msra.mxu0 %v165
    %196 = vmatprep.subr.mxu0 0.0
    %197 = vmatpush1.msra.mxu0 %v166
    %198 = vmatprep.subr.mxu0 0.0
    %199 = vmatpush1.msra.mxu0 %v167
    %200 = vmatprep.subr.mxu0 0.0
    %201 = vmatpush1.msra.mxu0 %v168
    %202 = vmatprep.subr.mxu0 0.0
    %203 = vmatpush1.msra.mxu0 %v169
    %204 = vmatprep.subr.mxu0 0.0
    %205 = vmatpush1.msra.mxu0 %v170
    %206 = vmatprep.subr.mxu0 0.0
    %207 = vmatpush1.msra.mxu0 %v171
    %208 = vmatprep.subr.mxu0 0.0
    %209 = vmatpush1.msra.mxu0 %v172
    %210 = vmatprep.subr.mxu0 0.0
    %211 = vmatpush1.msra.mxu0 %v173
    %212 = vmatprep.subr.mxu0 0.0
    %213 = vmatpush1.msra.mxu0 %v174
    %214 = vmatprep.subr.mxu0 0.0
    %215 = vmatpush1.msra.mxu0 0.0
    %216 = vmatprep.subr.mxu0 0.0
    %217 = vmatpush1.msra.mxu0 0.0
    %218 = vmatprep.subr.mxu0 0.0
    %219 = vmatpush1.msra.mxu0 0.0
    %220 = vmatprep.subr.mxu0 0.0
    %221 = vmatpush1.msra.mxu0 0.0
    %222 = vmatprep.subr.mxu0 0.0
    %223 = vmatpush1.msra.mxu0 0.0
    %224 = vmatprep.subr.mxu0 0.0
    %225 = vmatpush1.msra.mxu0 0.0
    %226 = vmatprep.subr.mxu0 0.0
    %227 = vmatpush1.msra.mxu0 0.0
    %228 = vmatprep.subr.mxu0 0.0
    %229 = vmatpush1.msra.mxu0 0.0
    %230 = vmatprep.subr.mxu0 0.0
    %231 = vmatpush1.msra.mxu0 0.0
    %232 = vmatprep.subr.mxu0 0.0
    %233 = vmatpush1.msra.mxu0 0.0
    %234 = vmatprep.subr.mxu0 0.0
    %235 = vmatpush1.msra.mxu0 0.0
    %236 = vmatprep.subr.mxu0 0.0
    %237 = vmatpush1.msra.mxu0 0.0
    %238 = vmatprep.subr.mxu0 0.0
    %239 = vmatpush1.msra.mxu0 0.0
    %240 = vmatprep.subr.mxu0 0.0
    %241 = vmatpush1.msra.mxu0 0.0
    %242 = vmatprep.subr.mxu0 0.0
    %243 = vmatpush1.msra.mxu0 0.0
    %244 = vmatprep.subr.mxu0 0.0
    %245 = vmatpush1.msra.mxu0 0.0
    %246 = vmatprep.mubr.f32.mxu0 0.0
    %247 = vmatmul.mubr.f32.gmra.mrb[0].mxu0 %v158
    %v248 = vpop.f32.mrb[0].mxu0
    %v249 = vadd.f32 %v180, %v248
    %v250 = vpop.f32.mrb[0].mxu0
    %251 = vdwg.mxu0
    %v252 = vtanh.pop %v249
    %v253 = vld [vmem:[#allocation5] sm:$0xff]
    %v254 = vld [vmem:[#allocation5 + $0x8] sm:$0xff]
    %v255 = vld [vmem:[#allocation5 + $0x10] sm:$0xff]
    %v256 = vld [vmem:[#allocation5 + $0x18] sm:$0xff]
    %v257 = vld [vmem:[#allocation5 + $0x20] sm:$0xff]
    %v258 = vld [vmem:[#allocation5 + $0x28] sm:$0xff]
    %v259 = vld [vmem:[#allocation5 + $0x30] sm:$0xff]
    %v260 = vld [vmem:[#allocation5 + $0x38] sm:$0xff]
    %v261 = vld [vmem:[#allocation5 + $0x40] sm:$0xff]
    %v262 = vld [vmem:[#allocation5 + $0x48] sm:$0xff]
    %v263 = vld [vmem:[#allocation5 + $0x50] sm:$0xff]
    %v264 = vld [vmem:[#allocation5 + $0x58] sm:$0xff]
    %v265 = vld [vmem:[#allocation5 + $0x60] sm:$0xff]
    %v266 = vld [vmem:[#allocation5 + $0x68] sm:$0xff]
    %v267 = vld [vmem:[#allocation5 + $0x70] sm:$0xff]
    %v268 = vld [vmem:[#allocation5 + $0x78] sm:$0xff]
    %v269 = vld [vmem:[#allocation5 + $0x80] sm:$0xff]
    %v270 = vld [vmem:[#allocation5 + $0x88] sm:$0xff]
    %v271 = vld [vmem:[#allocation5 + $0x90] sm:$0xff]
    %v272 = vld [vmem:[#allocation5 + $0x98] sm:$0xff]
    %v273 = vld [vmem:[#allocation5 + $0xa0] sm:$0xff]
    %v274 = vld [vmem:[#allocation5 + $0xa8] sm:$0xff]
    %v275 = vld [vmem:[#allocation5 + $0xb0] sm:$0xff]
    %v276 = vld [vmem:[#allocation5 + $0xb8] sm:$0xff]
    %v277 = vld [vmem:[#allocation5 + $0xc0] sm:$0xff]
    %v278 = vld [vmem:[#allocation5 + $0xc8] sm:$0xff]
    %v279 = vld [vmem:[#allocation5 + $0xd0] sm:$0xff]
    %v280 = vld [vmem:[#allocation5 + $0xd8] sm:$0xff]
    %v281 = vld [vmem:[#allocation5 + $0xe0] sm:$0xff]
    %v282 = vld [vmem:[#allocation5 + $0xe8] sm:$0xff]
    %v283 = vld [vmem:[#allocation5 + $0xf0] sm:$0xff]
    %v284 = vld [vmem:[#allocation5 + $0xf8] sm:$0xff]
    %v285 = vld [vmem:[%s6] sm:$0x3]
    %v287 = vlaneseq
    %v288 = vshrl.u32 %v287, 7
    %v289 = vsub.s32 0, %v288
    %v290 = vrot.slane %v285, %v289
    %v291 = vlaneseq
    %v292 = vshrl.u32 %v291, 7
    %v293 = vsub.s32 1, %v292
    %v294 = vrot.slane %v285, %v293
    %297 = vmatprep.subr.mxu0 %v254
    %298 = vmatpush1.msra.mxu0 %v253
    %299 = vmatprep.subr.mxu0 %v256
    %300 = vmatpush1.msra.mxu0 %v255
    %301 = vmatprep.subr.mxu0 %v258
    %302 = vmatpush1.msra.mxu0 %v257
    %303 = vmatprep.subr.mxu0 %v260
    %304 = vmatpush1.msra.mxu0 %v259
    %305 = vmatprep.subr.mxu0 %v262
    %306 = vmatpush1.msra.mxu0 %v261
    %307 = vmatprep.subr.mxu0 %v264
    %308 = vmatpush1.msra.mxu0 %v263
    %309 = vmatprep.subr.mxu0 %v266
    %310 = vmatpush1.msra.mxu0 %v265
    %311 = vmatprep.subr.mxu0 %v268
    %312 = vmatpush1.msra.mxu0 %v267
    %313 = vmatprep.subr.mxu0 %v270
    %314 = vmatpush1.msra.mxu0 %v269
    %315 = vmatprep.subr.mxu0 %v272
    %316 = vmatpush1.msra.mxu0 %v271
    %317 = vmatprep.subr.mxu0 %v274
    %318 = vmatpush1.msra.mxu0 %v273
    %319 = vmatprep.subr.mxu0 %v276
    %320 = vmatpush1.msra.mxu0 %v275
    %321 = vmatprep.subr.mxu0 %v278
    %322 = vmatpush1.msra.mxu0 %v277
    %323 = vmatprep.subr.mxu0 %v280
    %324 = vmatpush1.msra.mxu0 %v279
    %325 = vmatprep.subr.mxu0 %v282
    %326 = vmatpush1.msra.mxu0 %v281
    %327 = vmatprep.subr.mxu0 %v284
    %328 = vmatpush1.msra.mxu0 %v283
    %329 = vmatprep.subr.mxu0 0.0
    %330 = vmatpush1.msra.mxu0 0.0
    %331 = vmatprep.subr.mxu0 0.0
    %332 = vmatpush1.msra.mxu0 0.0
    %333 = vmatprep.subr.mxu0 0.0
    %334 = vmatpush1.msra.mxu0 0.0
    %335 = vmatprep.subr.mxu0 0.0
    %336 = vmatpush1.msra.mxu0 0.0
    %337 = vmatprep.subr.mxu0 0.0
    %338 = vmatpush1.msra.mxu0 0.0
    %339 = vmatprep.subr.mxu0 0.0
    %340 = vmatpush1.msra.mxu0 0.0
    %341 = vmatprep.subr.mxu0 0.0
    %342 = vmatpush1.msra.mxu0 0.0
    %343 = vmatprep.subr.mxu0 0.0
    %344 = vmatpush1.msra.mxu0 0.0
    %345 = vmatprep.subr.mxu0 0.0
    %346 = vmatpush1.msra.mxu0 0.0
    %347 = vmatprep.subr.mxu0 0.0
    %348 = vmatpush1.msra.mxu0 0.0
    %349 = vmatprep.subr.mxu0 0.0
    %350 = vmatpush1.msra.mxu0 0.0
    %351 = vmatprep.subr.mxu0 0.0
    %352 = vmatpush1.msra.mxu0 0.0
    %353 = vmatprep.subr.mxu0 0.0
    %354 = vmatpush1.msra.mxu0 0.0
    %355 = vmatprep.subr.mxu0 0.0
    %356 = vmatpush1.msra.mxu0 0.0
    %357 = vmatprep.subr.mxu0 0.0
    %358 = vmatpush1.msra.mxu0 0.0
    %359 = vmatprep.subr.mxu0 0.0
    %360 = vmatpush1.msra.mxu0 0.0
    %361 = vmatprep.mubr.f32.mxu0 0.0
    %362 = vmatmul.mubr.f32.gmra.mrb[0].mxu0 %v252
    %v363 = vpop.f32.mrb[0].mxu0
    %v364 = vadd.f32 %v290, %v363
    %v365 = vpop.f32.mrb[0].mxu0
    %v366 = vadd.f32 %v294, %v365
    %367 = vdwg.mxu0
    %368 = vst [vmem:[#allocation7] sm:$0xff] %v364
    %369 = vst [vmem:[#allocation7 + $0x8] sm:$0xff] %v366
    %v370 = vld [vmem:[%s7] sm:$0xff]
    %v371 = vld [vmem:[%s7 + $0x8] sm:$0xff]
    %v372 = vld [vmem:[%s7 + $0x10] sm:$0xff]
    %v373 = vld [vmem:[%s7 + $0x18] sm:$0xff]
    %v374 = vld [vmem:[%s7 + $0x20] sm:$0xff]
    %v375 = vld [vmem:[%s7 + $0x28] sm:$0xff]
    %v376 = vld [vmem:[%s7 + $0x30] sm:$0xff]
    %v377 = vld [vmem:[%s7 + $0x38] sm:$0xff]
    %v378 = vld [vmem:[%s7 + $0x40] sm:$0xff]
    %v379 = vld [vmem:[%s7 + $0x48] sm:$0xff]
    %v380 = vld [vmem:[%s7 + $0x50] sm:$0xff]
    %v381 = vld [vmem:[%s7 + $0x58] sm:$0xff]
    %v382 = vld [vmem:[%s7 + $0x60] sm:$0xff]
    %v383 = vld [vmem:[%s7 + $0x68] sm:$0xff]
    %v384 = vld [vmem:[%s7 + $0x70] sm:$0xff]
    %v385 = vld [vmem:[%s7 + $0x78] sm:$0xff]
    %v386 = vld [vmem:[%s8] sm:$0x1]
    %v388 = vlaneseq
    %v389 = vshrl.u32 %v388, 7
    %v390 = vsub.s32 0, %v389
    %v391 = vrot.slane %v386, %v390
    %393 = vmatprep.subr.mxu0 0.0
    %394 = vmatpush1.msra.mxu0 %v370
    %395 = vmatprep.subr.mxu0 0.0
    %396 = vmatpush1.msra.mxu0 %v371
    %397 = vmatprep.subr.mxu0 0.0
    %398 = vmatpush1.msra.mxu0 %v372
    %399 = vmatprep.subr.mxu0 0.0
    %400 = vmatpush1.msra.mxu0 %v373
    %401 = vmatprep.subr.mxu0 0.0
    %402 = vmatpush1.msra.mxu0 %v374
    %403 = vmatprep.subr.mxu0 0.0
    %404 = vmatpush1.msra.mxu0 %v375
    %405 = vmatprep.subr.mxu0 0.0
    %406 = vmatpush1.msra.mxu0 %v376
    %407 = vmatprep.subr.mxu0 0.0
    %408 = vmatpush1.msra.mxu0 %v377
    %409 = vmatprep.subr.mxu0 0.0
    %410 = vmatpush1.msra.mxu0 %v378
    %411 = vmatprep.subr.mxu0 0.0
    %412 = vmatpush1.msra.mxu0 %v379
    %413 = vmatprep.subr.mxu0 0.0
    %414 = vmatpush1.msra.mxu0 %v380
    %415 = vmatprep.subr.mxu0 0.0
    %416 = vmatpush1.msra.mxu0 %v381
    %417 = vmatprep.subr.mxu0 0.0
    %418 = vmatpush1.msra.mxu0 %v382
    %419 = vmatprep.subr.mxu0 0.0
    %420 = vmatpush1.msra.mxu0 %v383
    %421 = vmatprep.subr.mxu0 0.0
    %422 = vmatpush1.msra.mxu0 %v384
    %423 = vmatprep.subr.mxu0 0.0
    %424 = vmatpush1.msra.mxu0 %v385
    %425 = vmatprep.subr.mxu0 0.0
    %426 = vmatpush1.msra.mxu0 0.0
    %427 = vmatprep.subr.mxu0 0.0
    %428 = vmatpush1.msra.mxu0 0.0
    %429 = vmatprep.subr.mxu0 0.0
    %430 = vmatpush1.msra.mxu0 0.0
    %431 = vmatprep.subr.mxu0 0.0
    %432 = vmatpush1.msra.mxu0 0.0
    %433 = vmatprep.subr.mxu0 0.0
    %434 = vmatpush1.msra.mxu0 0.0
    %435 = vmatprep.subr.mxu0 0.0
    %436 = vmatpush1.msra.mxu0 0.0
    %437 = vmatprep.subr.mxu0 0.0
    %438 = vmatpush1.msra.mxu0 0.0
    %439 = vmatprep.subr.mxu0 0.0
    %440 = vmatpush1.msra.mxu0 0.0
    %441 = vmatprep.subr.mxu0 0.0
    %442 = vmatpush1.msra.mxu0 0.0
    %443 = vmatprep.subr.mxu0 0.0
    %444 = vmatpush1.msra.mxu0 0.0
    %445 = vmatprep.subr.mxu0 0.0
    %446 = vmatpush1.msra.mxu0 0.0
    %447 = vmatprep.subr.mxu0 0.0
    %448 = vmatpush1.msra.mxu0 0.0
    %449 = vmatprep.subr.mxu0 0.0
    %450 = vmatpush1.msra.mxu0 0.0
    %451 = vmatprep.subr.mxu0 0.0
    %452 = vmatpush1.msra.mxu0 0.0
    %453 = vmatprep.subr.mxu0 0.0
    %454 = vmatpush1.msra.mxu0 0.0
    %455 = vmatprep.subr.mxu0 0.0
    %456 = vmatpush1.msra.mxu0 0.0
    %457 = vmatprep.mubr.f32.mxu0 0.0
    %458 = vmatmul.mubr.f32.gmra.mrb[0].mxu0 %v252
    %v459 = vpop.f32.mrb[0].mxu0
    %v460 = vadd.f32 %v391, %v459
    %v461 = vpop.f32.mrb[0].mxu0
    %462 = vdwg.mxu0
    %vm463 = vcmask 261120
    %464 = vst.msk [vmem:[#allocation8] sm:$0xff] %vm463, %v460
    // Predicated region
    $region46: #{tpu_custom_call.1} parent=1 // pred_check
      _
    $region47: #{tpu_custom_call.1} parent=1 // pred_check_branch
      %466 = sbr.rel (0) target = $region49
    $region48: #{tpu_custom_call.1} parent=1 // pred_region
      %s468 = ssub.s32 256, 256
      %469 = vsyncadd [#allocation4], %s468
      %s471 = sshll.u32 [#allocation7], 4
      %s472 = int_to_ptr.vmem [resolvable:$true] %s471
      %474 = dma.vmem_to_hbm [thread:$0]  %s472, 256, %s9, [#allocation4]
    $region49: #{tpu_custom_call.1} parent=1 // pred_fallthru
      _
    // Predicated region
    $region50: #{tpu_custom_call.1} parent=1 // pred_check
      _
    $region51: #{tpu_custom_call.1} parent=1 // pred_check_branch
      %476 = sbr.rel (0) target = $region53
    $region52: #{tpu_custom_call.1} parent=1 // pred_region
      %s478 = ssub.s32 128, 128
      %479 = vsyncadd [#allocation9], %s478
      %s481 = sshll.u32 [#allocation8], 4
      %s482 = int_to_ptr.vmem [resolvable:$true] %s481
      %484 = dma.vmem_to_hbm [thread:$0]  %s482, 128, %s10, [#allocation9]
    $region53: #{tpu_custom_call.1} parent=1 // pred_fallthru
      _
    // Predicated region
    $region54: #{tpu_custom_call.1} parent=1 // pred_check
      _
    $region55: #{tpu_custom_call.1} parent=1 // pred_check_branch
      %486 = sbr.rel (0) target = $region57
    $region56: #{tpu_custom_call.1} parent=1 // pred_region
      %487 = dma.done [#allocation4], 256
    $region57: #{tpu_custom_call.1} parent=1 // pred_fallthru
      _
    // Predicated region
    $region58: #{tpu_custom_call.1} parent=1 // pred_check
      _
    $region59: #{tpu_custom_call.1} parent=1 // pred_check_branch
      %489 = sbr.rel (0) target = $region61
    $region60: #{tpu_custom_call.1} parent=1 // pred_region
      %490 = dma.done [#allocation9], 128
    $region61: #{tpu_custom_call.1} parent=1 // pred_fallthru
      _
    %491 = vsyncpa [#allocation3], 1
    %492 = vsyncpa [#allocation6], 1
    %493 = vsyncpa [#allocation4], 1
    %494 = vsyncpa [#allocation9], 1

</llo_original>
